<compile_context>
chip_gen: v5e
topology: v5e:2x2
jax: 0.10.0
libtpu: 0.0.40
codegen_flags: <defaults>
</compile_context>

<pallas_src>
import functools

import jax
import jax.numpy as jnp
from jax.experimental import pallas as pl
from jax.experimental.pallas import tpu as pltpu


def _round_up(x, m):
    return (x + m - 1) // m * m


def _oab_kernel(kc_pad, m_actual, with_sim,
                x_ref, p_ref, w_in_ref, w_kk_ref, w_up_ref, b_ref,
                *rest):
    if with_sim:
        out_ref, sim_ref, k_sc, v_sc = rest
    else:
        out_ref, k_sc, v_sc = rest
        sim_ref = None
    c_pad = out_ref.shape[-1]
    m_pad = k_sc.shape[0]

    def proj(inp, w, b):
        # 1x1 conv (+ folded BN scale) as bf16 matmul, f32 accumulation, f32 bias + ReLU.
        y = jnp.dot(inp.astype(jnp.bfloat16), w,
                    preferred_element_type=jnp.float32)
        return jnp.maximum(y + b, 0.0)

    # key / value from the proxy: compute once per batch element, keep in VMEM scratch.
    @pl.when(pl.program_id(1) == 0)
    def _():
        p = p_ref[0]                                              # (M_pad, C_pad) bf16
        k1 = proj(p, w_in_ref[1], b_ref[2:3, :kc_pad])            # f_object conv1
        k = proj(k1, w_kk_ref[1], b_ref[3:4, :kc_pad])            # f_object conv2
        v = proj(p, w_in_ref[2], b_ref[4:5, :kc_pad])             # f_down
        k_sc[...] = k.astype(jnp.bfloat16)
        v_sc[...] = v.astype(jnp.bfloat16)

    # query for this pixel tile (f_pixel); key_channels**-0.5 folded into conv2's w & b.
    x = x_ref[0]                                                  # (T_HW, C_pad) bf16
    q1 = proj(x, w_in_ref[0], b_ref[0:1, :kc_pad])
    q = proj(q1, w_kk_ref[0], b_ref[1:2, :kc_pad])

    # logits = q @ k^T without materializing a transposed copy of k.
    logits = jax.lax.dot_general(
        q.astype(jnp.bfloat16), k_sc[...],
        dimension_numbers=(((1,), (1,)), ((), ())),
        preferred_element_type=jnp.float32)                       # (T_HW, M_pad)
    if m_actual < m_pad:
        col = jax.lax.broadcasted_iota(jnp.int32, logits.shape, 1)
        logits = jnp.where(col < m_actual, logits, -1e30)         # mask padded objects

    mx = jnp.max(logits, axis=-1, keepdims=True)
    e = jnp.exp(logits - mx)
    denom = jnp.sum(e, axis=-1, keepdims=True)
    sim = e * pl.reciprocal(denom, approx=True)                   # EUP, not VPU divide

    # context = sim @ value, then f_up back to C channels.
    ctx = jnp.dot(sim.astype(jnp.bfloat16), v_sc[...],
                  preferred_element_type=jnp.float32)             # (T_HW, Kc_pad)
    out = proj(ctx, w_up_ref[...], b_ref[5:6, :c_pad])            # (T_HW, C_pad)

    out_ref[0] = out
    if with_sim:
        sim_ref[0] = sim


def object_attention_block(x, proxy, params, key_channels, *,
                           tile_hw=1024, return_sim_map=True):
    """x: (N, C, H, W), proxy: (N, C, Hp, Wp).
    Returns (context (N,C,H,W), sim_map (N,HW,M)) [sim_map only if return_sim_map]."""
    N, C, H, W = x.shape
    _, _, Hp, Wp = proxy.shape
    HW, M = H * W, Hp * Wp

    # Lane-dense padded sizes (multiples of 128) and HW tiling (multiple of 8 sublanes).
    c_pad = _round_up(C, 128)
    kc_pad = _round_up(key_channels, 128)
    m_pad = _round_up(M, 128)
    t_hw = min(_round_up(tile_hw, 8), _round_up(HW, 8))
    hw_pad = _round_up(HW, t_hw)
    n_tiles = hw_pad // t_hw

    (wp1, sp1, bp1, wp2, sp2, bp2,
     wo1, so1, bo1, wo2, so2, bo2,
     wd, sd, bd, wu, su, bu) = params

    kc_scale = float(key_channels) ** -0.5

    def fold(w, s):                       # fold BN scale into conv output channels
        return w * s.reshape(1, -1)

    def pad2(a, r, c):
        return jnp.zeros((r, c), jnp.float32).at[:a.shape[0], :a.shape[1]].set(a)

    def pad_bias(b, n):
        b = b.reshape(-1)
        return jnp.zeros((n,), jnp.float32).at[:b.shape[0]].set(b)

    b_pad_len = max(kc_pad, c_pad)
    # Consolidated, padded, bf16 weights (scale folded in); biases stay f32.
    w_in = jnp.stack([pad2(fold(wp1, sp1), c_pad, kc_pad),
                      pad2(fold(wo1, so1), c_pad, kc_pad),
                      pad2(fold(wd, sd), c_pad, kc_pad)]).astype(jnp.bfloat16)
    w_kk = jnp.stack([pad2(fold(wp2, sp2) * kc_scale, kc_pad, kc_pad),
                      pad2(fold(wo2, so2), kc_pad, kc_pad)]).astype(jnp.bfloat16)
    w_up = pad2(fold(wu, su), kc_pad, c_pad).astype(jnp.bfloat16)
    biases = jnp.stack([pad_bias(bp1, b_pad_len),
                        pad_bias(bp2 * kc_scale, b_pad_len),
                        pad_bias(bo1, b_pad_len),
                        pad_bias(bo2, b_pad_len),
                        pad_bias(bd, b_pad_len),
                        pad_bias(bu, b_pad_len)])

    # Channels-last, flattened, zero-padded, bf16 activations (halves DMA bytes).
    x_flat = jnp.transpose(x, (0, 2, 3, 1)).reshape(N, HW, C)
    p_flat = jnp.transpose(proxy, (0, 2, 3, 1)).reshape(N, M, C)
    x_in = jnp.zeros((N, hw_pad, c_pad), jnp.bfloat16).at[:, :HW, :C].set(
        x_flat.astype(jnp.bfloat16))
    p_in = jnp.zeros((N, m_pad, c_pad), jnp.bfloat16).at[:, :M, :C].set(
        p_flat.astype(jnp.bfloat16))

    in_specs = [
        pl.BlockSpec((1, t_hw, c_pad), lambda b, t: (b, t, 0)),    # x pixel tile
        pl.BlockSpec((1, m_pad, c_pad), lambda b, t: (b, 0, 0)),   # proxy (re-DMA only on new b)
        pl.BlockSpec((3, c_pad, kc_pad), lambda b, t: (0, 0, 0)),  # wp1 / wo1 / wd
        pl.BlockSpec((2, kc_pad, kc_pad), lambda b, t: (0, 0, 0)), # wp2 / wo2
        pl.BlockSpec((kc_pad, c_pad), lambda b, t: (0, 0)),        # wu
        pl.BlockSpec((6, b_pad_len), lambda b, t: (0, 0)),         # packed biases
    ]

    out_shapes = [jax.ShapeDtypeStruct((N, hw_pad, c_pad), jnp.float32)]
    out_specs = [pl.BlockSpec((1, t_hw, c_pad), lambda b, t: (b, t, 0))]
    if return_sim_map:
        out_shapes.append(jax.ShapeDtypeStruct((N, hw_pad, m_pad), jnp.float32))
        out_specs.append(pl.BlockSpec((1, t_hw, m_pad), lambda b, t: (b, t, 0)))

    kernel = functools.partial(_oab_kernel, kc_pad, M, return_sim_map)

    results = pl.pallas_call(
        kernel,
        out_shape=tuple(out_shapes),
        grid_spec=pltpu.PrefetchScalarGridSpec(
            num_scalar_prefetch=0,
            grid=(N, n_tiles),
            in_specs=in_specs,
            out_specs=out_specs,
            scratch_shapes=[pltpu.VMEM((m_pad, kc_pad), jnp.bfloat16),   # key
                            pltpu.VMEM((m_pad, kc_pad), jnp.bfloat16)],  # value
        ),
        compiler_params=pltpu.CompilerParams(
            # Batch axis is megacore-parallel; the HW-tile axis must stay "arbitrary"
            # because tile 0 populates the k/v scratch that later tiles of the same
            # batch element reuse.
            dimension_semantics=("parallel", "arbitrary"),
            vmem_limit_bytes=64 * 1024 * 1024,   # headroom-safe on v7x, > 32 MiB default
        ),
    )(x_in, p_in, w_in, w_kk, w_up, biases)

    out_flat = results[0]
    context = jnp.transpose(out_flat[:, :HW, :C].reshape(N, H, W, C), (0, 3, 1, 2))
    if return_sim_map:
        sim_map = results[1][:, :HW, :M]
        return context, sim_map
    return context


def make_params(key, in_channels, key_channels):
    """Deterministic weights. Conv2d(out,in,1,1) weights transposed to (in,out) for matmul.
    Eval-mode BatchNorm folded: scale = gamma/sqrt(var+eps), bias = beta - mean*scale."""
    eps = 1e-5
    keys = jax.random.split(key, 30)
    ki = iter(keys)

    def conv_w(cin, cout):
        return jax.random.normal(next(ki), (cin, cout), jnp.float32) * 0.1

    def bn(c):
        gamma = 1.0 + 0.1 * jax.random.normal(next(ki), (c,), jnp.float32)
        beta = 0.1 * jax.random.normal(next(ki), (c,), jnp.float32)
        mean = 0.1 * jax.random.normal(next(ki), (c,), jnp.float32)
        var = jnp.abs(jax.random.normal(next(ki), (c,), jnp.float32)) + 0.5
        scale = gamma / jnp.sqrt(var + eps)
        bias = beta - mean * scale
        return scale.reshape(1, c), bias.reshape(1, c)

    C, Kc = in_channels, key_channels
    wp1 = conv_w(C, Kc); sp1, bp1 = bn(Kc)
    wp2 = conv_w(Kc, Kc); sp2, bp2 = bn(Kc)
    wo1 = conv_w(C, Kc); so1, bo1 = bn(Kc)
    wo2 = conv_w(Kc, Kc); so2, bo2 = bn(Kc)
    wd = conv_w(C, Kc); sd, bd = bn(Kc)
    wu = conv_w(Kc, C); su, bu = bn(C)
    return (wp1, sp1, bp1, wp2, sp2, bp2,
            wo1, so1, bo1, wo2, so2, bo2,
            wd, sd, bd, wu, su, bu)


def reference(x, proxy, params, key_channels):
    """Pure-JAX reference mirroring the PyTorch forward (scale=1, eval-mode BN)."""
    (wp1, sp1, bp1, wp2, sp2, bp2,
     wo1, so1, bo1, wo2, so2, bo2,
     wd, sd, bd, wu, su, bu) = params
    N, C, H, W = x.shape
    M = proxy.shape[2] * proxy.shape[3]
    xf = jnp.transpose(x, (0, 2, 3, 1)).reshape(N, H * W, C)
    pf = jnp.transpose(proxy, (0, 2, 3, 1)).reshape(N, M, C)

    def cbr(inp, w, s, b):
        return jnp.maximum(inp @ w * s + b, 0.0)

    q = cbr(cbr(xf, wp1, sp1, bp1), wp2, sp2, bp2)
    k = cbr(cbr(pf, wo1, so1, bo1), wo2, so2, bo2)
    v = cbr(pf, wd, sd, bd)
    sim = jax.nn.softmax(jnp.einsum('nqc,nkc->nqk', q, k) * key_channels ** -0.5, axis=-1)
    ctx = jnp.einsum('nqk,nkc->nqc', sim, v)
    out = cbr(ctx, wu, su, bu)
    context = jnp.transpose(out.reshape(N, H, W, C), (0, 3, 1, 2))
    return context, sim


if __name__ == "__main__":
    key = jax.random.PRNGKey(0)
    N, C, H, W = 2, 4, 16, 16       # input feature map
    Kc = 8                          # key_channels
    Hp, Wp = 8, 1                   # proxy (object region descriptors): M = 8

    kx, kp, kw = jax.random.split(key, 3)
    x = jax.random.normal(kx, (N, C, H, W), jnp.float32)
    proxy = jax.random.normal(kp, (N, C, Hp, Wp), jnp.float32)
    params = make_params(kw, C, Kc)

    # tile_hw=128 -> 2 HW tiles per batch element, exercising the pipelined-tile path
    # and the k/v scratch reuse across tiles.
    context, sim_map = object_attention_block(x, proxy, params, Kc, tile_hw=128)
    jax.block_until_ready((context, sim_map))

    ref_ctx, ref_sim = reference(x, proxy, params, Kc)
    assert context.shape == (N, C, H, W)
    assert sim_map.shape == (N, H * W, Hp * Wp)
    # bf16 matmul operands (f32 accumulation) + approx reciprocal -> looser tolerances
    # than the pure-f32 variant.
    assert jnp.allclose(context, ref_ctx, atol=2e-2, rtol=2e-2), "context mismatch"
    assert jnp.allclose(sim_map, ref_sim, atol=2e-3, rtol=2e-2), "sim_map mismatch"

    print("KERNEL_OK")
</pallas_src>

<mosaic_0001>
module attributes {stable_mosaic.version = 11 : i64} {
  func.func @_oab_kernel(%arg0: i32, %arg1: i32, %arg2: memref<1x128x128xbf16, #tpu.memory_space<vmem>>, %arg3: memref<1x128x128xbf16, #tpu.memory_space<vmem>>, %arg4: memref<3x128x128xbf16, #tpu.memory_space<vmem>>, %arg5: memref<2x128x128xbf16, #tpu.memory_space<vmem>>, %arg6: memref<128x128xbf16, #tpu.memory_space<vmem>>, %arg7: memref<6x128xf32, #tpu.memory_space<vmem>>, %arg8: memref<1x128x128xf32, #tpu.memory_space<vmem>>, %arg9: memref<1x128x128xf32, #tpu.memory_space<vmem>>, %arg10: memref<128x128xbf16, #tpu.memory_space<vmem>>, %arg11: memref<128x128xbf16, #tpu.memory_space<vmem>>) attributes {dimension_semantics = [#tpu.dimension_semantics<parallel>, #tpu.dimension_semantics<arbitrary>], iteration_bounds = array<i64: 2, 2>, scalar_prefetch = 0 : i64, scratch_operands = 2 : i64, tpu.core_type = #tpu.core_type<tc>, window_params = [{transform_indices = @transform_0, window_bounds = array<i64: 1, 128, 128>}, {transform_indices = @transform_1, window_bounds = array<i64: 1, 128, 128>}, {pipeline_mode = #tpu.pipeline_mode<synchronous>, transform_indices = @transform_2, window_bounds = array<i64: 3, 128, 128>}, {pipeline_mode = #tpu.pipeline_mode<synchronous>, transform_indices = @transform_3, window_bounds = array<i64: 2, 128, 128>}, {pipeline_mode = #tpu.pipeline_mode<synchronous>, transform_indices = @transform_4, window_bounds = array<i64: 128, 128>}, {pipeline_mode = #tpu.pipeline_mode<synchronous>, transform_indices = @transform_5, window_bounds = array<i64: 6, 128>}, {transform_indices = @transform_6, window_bounds = array<i64: 1, 128, 128>}, {transform_indices = @transform_7, window_bounds = array<i64: 1, 128, 128>}]} {
    %c0_i32 = arith.constant 0 : i32
    %0 = arith.cmpi eq, %arg1, %c0_i32 : i32
    %1 = arith.extui %0 : i1 to i32
    %c0_i32_0 = arith.constant 0 : i32
    %2 = arith.cmpi ne, %1, %c0_i32_0 : i32
    scf.if %2 {
      %c0_35 = arith.constant 0 : index
      %c0_36 = arith.constant 0 : index
      %c0_37 = arith.constant 0 : index
      %57 = vector.load %arg3[%c0_35, %c0_36, %c0_37] : memref<1x128x128xbf16, #tpu.memory_space<vmem>>, vector<1x128x128xbf16>
      %58 = vector.shape_cast %57 : vector<1x128x128xbf16> to vector<128x128xbf16>
      %c1_38 = arith.constant 1 : index
      %c0_39 = arith.constant 0 : index
      %c0_40 = arith.constant 0 : index
      %59 = vector.load %arg4[%c1_38, %c0_39, %c0_40] : memref<3x128x128xbf16, #tpu.memory_space<vmem>>, vector<1x128x128xbf16>
      %60 = vector.shape_cast %59 : vector<1x128x128xbf16> to vector<128x128xbf16>
      %c2 = arith.constant 2 : index
      %c0_41 = arith.constant 0 : index
      %61 = vector.load %arg7[%c2, %c0_41] : memref<6x128xf32, #tpu.memory_space<vmem>>, vector<1x128xf32>
      %cst_42 = arith.constant dense<0.000000e+00> : vector<128x128xf32>
      %62 = tpu.matmul %58, %60, %cst_42 {dimension_numbers = #tpu.dot_dimension_numbers<[1], [0], [0], [1], [0, 0, 1, 1], [], []>} : vector<128x128xbf16>, vector<128x128xbf16>, vector<128x128xf32> -> vector<128x128xf32>
      %63 = vector.broadcast %61 : vector<1x128xf32> to vector<128x128xf32>
      %64 = arith.addf %62, %63 : vector<128x128xf32>
      %cst_43 = arith.constant 0.000000e+00 : f32
      %65 = vector.broadcast %cst_43 : f32 to vector<128x128xf32>
      %66 = arith.maximumf %64, %65 : vector<128x128xf32>
      %c1_44 = arith.constant 1 : index
      %c0_45 = arith.constant 0 : index
      %c0_46 = arith.constant 0 : index
      %67 = vector.load %arg5[%c1_44, %c0_45, %c0_46] : memref<2x128x128xbf16, #tpu.memory_space<vmem>>, vector<1x128x128xbf16>
      %68 = vector.shape_cast %67 : vector<1x128x128xbf16> to vector<128x128xbf16>
      %c3 = arith.constant 3 : index
      %c0_47 = arith.constant 0 : index
      %69 = vector.load %arg7[%c3, %c0_47] : memref<6x128xf32, #tpu.memory_space<vmem>>, vector<1x128xf32>
      %70 = arith.truncf %66 : vector<128x128xf32> to vector<128x128xbf16>
      %cst_48 = arith.constant dense<0.000000e+00> : vector<128x128xf32>
      %71 = tpu.matmul %70, %68, %cst_48 {dimension_numbers = #tpu.dot_dimension_numbers<[1], [0], [0], [1], [0, 0, 1, 1], [], []>} : vector<128x128xbf16>, vector<128x128xbf16>, vector<128x128xf32> -> vector<128x128xf32>
      %72 = vector.broadcast %69 : vector<1x128xf32> to vector<128x128xf32>
      %73 = arith.addf %71, %72 : vector<128x128xf32>
      %cst_49 = arith.constant 0.000000e+00 : f32
      %74 = vector.broadcast %cst_49 : f32 to vector<128x128xf32>
      %75 = arith.maximumf %73, %74 : vector<128x128xf32>
      %c2_50 = arith.constant 2 : index
      %c0_51 = arith.constant 0 : index
      %c0_52 = arith.constant 0 : index
      %76 = vector.load %arg4[%c2_50, %c0_51, %c0_52] : memref<3x128x128xbf16, #tpu.memory_space<vmem>>, vector<1x128x128xbf16>
      %77 = vector.shape_cast %76 : vector<1x128x128xbf16> to vector<128x128xbf16>
      %c4 = arith.constant 4 : index
      %c0_53 = arith.constant 0 : index
      %78 = vector.load %arg7[%c4, %c0_53] : memref<6x128xf32, #tpu.memory_space<vmem>>, vector<1x128xf32>
      %cst_54 = arith.constant dense<0.000000e+00> : vector<128x128xf32>
      %79 = tpu.matmul %58, %77, %cst_54 {dimension_numbers = #tpu.dot_dimension_numbers<[1], [0], [0], [1], [0, 0, 1, 1], [], []>} : vector<128x128xbf16>, vector<128x128xbf16>, vector<128x128xf32> -> vector<128x128xf32>
      %80 = vector.broadcast %78 : vector<1x128xf32> to vector<128x128xf32>
      %81 = arith.addf %79, %80 : vector<128x128xf32>
      %cst_55 = arith.constant 0.000000e+00 : f32
      %82 = vector.broadcast %cst_55 : f32 to vector<128x128xf32>
      %83 = arith.maximumf %81, %82 : vector<128x128xf32>
      %84 = arith.truncf %75 : vector<128x128xf32> to vector<128x128xbf16>
      %c0_56 = arith.constant 0 : index
      %c0_57 = arith.constant 0 : index
      %85 = vector.load %arg10[%c0_56, %c0_57] : memref<128x128xbf16, #tpu.memory_space<vmem>>, vector<128x128xbf16>
      tpu.vector_store %arg10[%c0_56, %c0_57], %84 {strides = array<i32>} : memref<128x128xbf16, #tpu.memory_space<vmem>>, vector<128x128xbf16>,
      %86 = arith.truncf %83 : vector<128x128xf32> to vector<128x128xbf16>
      %c0_58 = arith.constant 0 : index
      %c0_59 = arith.constant 0 : index
      %87 = vector.load %arg11[%c0_58, %c0_59] : memref<128x128xbf16, #tpu.memory_space<vmem>>, vector<128x128xbf16>
      tpu.vector_store %arg11[%c0_58, %c0_59], %86 {strides = array<i32>} : memref<128x128xbf16, #tpu.memory_space<vmem>>, vector<128x128xbf16>,
    } else {
    }
    %c0 = arith.constant 0 : index
    %c0_1 = arith.constant 0 : index
    %c0_2 = arith.constant 0 : index
    %3 = vector.load %arg2[%c0, %c0_1, %c0_2] : memref<1x128x128xbf16, #tpu.memory_space<vmem>>, vector<1x128x128xbf16>
    %4 = vector.shape_cast %3 : vector<1x128x128xbf16> to vector<128x128xbf16>
    %c0_3 = arith.constant 0 : index
    %c0_4 = arith.constant 0 : index
    %c0_5 = arith.constant 0 : index
    %5 = vector.load %arg4[%c0_3, %c0_4, %c0_5] : memref<3x128x128xbf16, #tpu.memory_space<vmem>>, vector<1x128x128xbf16>
    %6 = vector.shape_cast %5 : vector<1x128x128xbf16> to vector<128x128xbf16>
    %c0_6 = arith.constant 0 : index
    %c0_7 = arith.constant 0 : index
    %7 = vector.load %arg7[%c0_6, %c0_7] : memref<6x128xf32, #tpu.memory_space<vmem>>, vector<1x128xf32>
    %cst = arith.constant dense<0.000000e+00> : vector<128x128xf32>
    %8 = tpu.matmul %4, %6, %cst {dimension_numbers = #tpu.dot_dimension_numbers<[1], [0], [0], [1], [0, 0, 1, 1], [], []>} : vector<128x128xbf16>, vector<128x128xbf16>, vector<128x128xf32> -> vector<128x128xf32>
    %9 = vector.broadcast %7 : vector<1x128xf32> to vector<128x128xf32>
    %10 = arith.addf %8, %9 : vector<128x128xf32>
    %cst_8 = arith.constant 0.000000e+00 : f32
    %11 = vector.broadcast %cst_8 : f32 to vector<128x128xf32>
    %12 = arith.maximumf %10, %11 : vector<128x128xf32>
    %c0_9 = arith.constant 0 : index
    %c0_10 = arith.constant 0 : index
    %c0_11 = arith.constant 0 : index
    %13 = vector.load %arg5[%c0_9, %c0_10, %c0_11] : memref<2x128x128xbf16, #tpu.memory_space<vmem>>, vector<1x128x128xbf16>
    %14 = vector.shape_cast %13 : vector<1x128x128xbf16> to vector<128x128xbf16>
    %c1 = arith.constant 1 : index
    %c0_12 = arith.constant 0 : index
    %15 = vector.load %arg7[%c1, %c0_12] : memref<6x128xf32, #tpu.memory_space<vmem>>, vector<1x128xf32>
    %16 = arith.truncf %12 : vector<128x128xf32> to vector<128x128xbf16>
    %cst_13 = arith.constant dense<0.000000e+00> : vector<128x128xf32>
    %17 = tpu.matmul %16, %14, %cst_13 {dimension_numbers = #tpu.dot_dimension_numbers<[1], [0], [0], [1], [0, 0, 1, 1], [], []>} : vector<128x128xbf16>, vector<128x128xbf16>, vector<128x128xf32> -> vector<128x128xf32>
    %18 = vector.broadcast %15 : vector<1x128xf32> to vector<128x128xf32>
    %19 = arith.addf %17, %18 : vector<128x128xf32>
    %cst_14 = arith.constant 0.000000e+00 : f32
    %20 = vector.broadcast %cst_14 : f32 to vector<128x128xf32>
    %21 = arith.maximumf %19, %20 : vector<128x128xf32>
    %22 = arith.truncf %21 : vector<128x128xf32> to vector<128x128xbf16>
    %c0_15 = arith.constant 0 : index
    %c0_16 = arith.constant 0 : index
    %23 = vector.load %arg10[%c0_15, %c0_16] : memref<128x128xbf16, #tpu.memory_space<vmem>>, vector<128x128xbf16>
    %cst_17 = arith.constant dense<0.000000e+00> : vector<128x128xf32>
    %24 = tpu.matmul %22, %23, %cst_17 {dimension_numbers = #tpu.dot_dimension_numbers<[1], [1], [0], [0], [0, 0, 1, 0], [], []>} : vector<128x128xbf16>, vector<128x128xbf16>, vector<128x128xf32> -> vector<128x128xf32>
    %25 = tpu.iota {dimensions = array<i32: 1>} : vector<128x128xi32>
    %c8_i32 = arith.constant 8 : i32
    %26 = vector.broadcast %c8_i32 : i32 to vector<128x128xi32>
    %27 = arith.cmpi slt, %25, %26 : vector<128x128xi32>
    %cst_18 = arith.constant -1.000000e+30 : f32
    %28 = vector.broadcast %cst_18 : f32 to vector<128x128xf32>
    %29 = arith.select %27, %24, %28 : vector<128x128xi1>, vector<128x128xf32>
    %cst_19 = arith.constant dense<0xFF800000> : vector<128xf32>
    %30 = vector.multi_reduction <maximumf>, %29, %cst_19 [1] : vector<128x128xf32> to vector<128xf32>
    %31 = vector.shape_cast %30 : vector<128xf32> to vector<128x1xf32>
    %32 = vector.broadcast %31 : vector<128x1xf32> to vector<128x128xf32>
    %33 = arith.subf %29, %32 : vector<128x128xf32>
    %34 = math.exp %33 : vector<128x128xf32>
    %cst_20 = arith.constant dense<0.000000e+00> : vector<128xf32>
    %35 = vector.multi_reduction <add>, %34, %cst_20 [1] : vector<128x128xf32> to vector<128xf32>
    %36 = vector.shape_cast %35 : vector<128xf32> to vector<128x1xf32>
    %37 = tpu.reciprocal %36 {approx = true} : vector<128x1xf32> -> vector<128x1xf32>
    %38 = vector.broadcast %37 : vector<128x1xf32> to vector<128x128xf32>
    %39 = arith.mulf %34, %38 : vector<128x128xf32>
    %40 = arith.truncf %39 : vector<128x128xf32> to vector<128x128xbf16>
    %c0_21 = arith.constant 0 : index
    %c0_22 = arith.constant 0 : index
    %41 = vector.load %arg11[%c0_21, %c0_22] : memref<128x128xbf16, #tpu.memory_space<vmem>>, vector<128x128xbf16>
    %cst_23 = arith.constant dense<0.000000e+00> : vector<128x128xf32>
    %42 = tpu.matmul %40, %41, %cst_23 {dimension_numbers = #tpu.dot_dimension_numbers<[1], [0], [0], [1], [0, 0, 1, 1], [], []>} : vector<128x128xbf16>, vector<128x128xbf16>, vector<128x128xf32> -> vector<128x128xf32>
    %c0_24 = arith.constant 0 : index
    %c0_25 = arith.constant 0 : index
    %43 = vector.load %arg6[%c0_24, %c0_25] : memref<128x128xbf16, #tpu.memory_space<vmem>>, vector<128x128xbf16>
    %c5 = arith.constant 5 : index
    %c0_26 = arith.constant 0 : index
    %44 = vector.load %arg7[%c5, %c0_26] : memref<6x128xf32, #tpu.memory_space<vmem>>, vector<1x128xf32>
    %45 = arith.truncf %42 : vector<128x128xf32> to vector<128x128xbf16>
    %cst_27 = arith.constant dense<0.000000e+00> : vector<128x128xf32>
    %46 = tpu.matmul %45, %43, %cst_27 {dimension_numbers = #tpu.dot_dimension_numbers<[1], [0], [0], [1], [0, 0, 1, 1], [], []>} : vector<128x128xbf16>, vector<128x128xbf16>, vector<128x128xf32> -> vector<128x128xf32>
    %47 = vector.broadcast %44 : vector<1x128xf32> to vector<128x128xf32>
    %48 = arith.addf %46, %47 : vector<128x128xf32>
    %cst_28 = arith.constant 0.000000e+00 : f32
    %49 = vector.broadcast %cst_28 : f32 to vector<128x128xf32>
    %50 = arith.maximumf %48, %49 : vector<128x128xf32>
    %c0_29 = arith.constant 0 : index
    %c0_30 = arith.constant 0 : index
    %c0_31 = arith.constant 0 : index
    %51 = vector.load %arg8[%c0_29, %c0_30, %c0_31] : memref<1x128x128xf32, #tpu.memory_space<vmem>>, vector<1x128x128xf32>
    %52 = vector.shape_cast %51 : vector<1x128x128xf32> to vector<128x128xf32>
    %53 = vector.shape_cast %50 : vector<128x128xf32> to vector<1x128x128xf32>
    tpu.vector_store %arg8[%c0_29, %c0_30, %c0_31], %53 {strides = array<i32>} : memref<1x128x128xf32, #tpu.memory_space<vmem>>, vector<1x128x128xf32>,
    %c0_32 = arith.constant 0 : index
    %c0_33 = arith.constant 0 : index
    %c0_34 = arith.constant 0 : index
    %54 = vector.load %arg9[%c0_32, %c0_33, %c0_34] : memref<1x128x128xf32, #tpu.memory_space<vmem>>, vector<1x128x128xf32>
    %55 = vector.shape_cast %54 : vector<1x128x128xf32> to vector<128x128xf32>
    %56 = vector.shape_cast %39 : vector<128x128xf32> to vector<1x128x128xf32>
    tpu.vector_store %arg9[%c0_32, %c0_33, %c0_34], %56 {strides = array<i32>} : memref<1x128x128xf32, #tpu.memory_space<vmem>>, vector<1x128x128xf32>,
    return
  }
  func.func @transform_0(%arg0: i32, %arg1: i32) -> (i32, i32, i32) {
    %c0_i32 = arith.constant 0 : i32
    %c0_i32_0 = arith.constant 0 : i32
    return %arg0, %arg1, %c0_i32 : i32, i32, i32
  }
  func.func @transform_1(%arg0: i32, %arg1: i32) -> (i32, i32, i32) {
    %c0_i32 = arith.constant 0 : i32
    %c0_i32_0 = arith.constant 0 : i32
    %c0_i32_1 = arith.constant 0 : i32
    return %arg0, %c0_i32, %c0_i32_0 : i32, i32, i32
  }
  func.func @transform_2(%arg0: i32, %arg1: i32) -> (i32, i32, i32) {
    %c0_i32 = arith.constant 0 : i32
    %c0_i32_0 = arith.constant 0 : i32
    %c0_i32_1 = arith.constant 0 : i32
    %c0_i32_2 = arith.constant 0 : i32
    return %c0_i32, %c0_i32_0, %c0_i32_1 : i32, i32, i32
  }
  func.func @transform_3(%arg0: i32, %arg1: i32) -> (i32, i32, i32) {
    %c0_i32 = arith.constant 0 : i32
    %c0_i32_0 = arith.constant 0 : i32
    %c0_i32_1 = arith.constant 0 : i32
    %c0_i32_2 = arith.constant 0 : i32
    return %c0_i32, %c0_i32_0, %c0_i32_1 : i32, i32, i32
  }
  func.func @transform_4(%arg0: i32, %arg1: i32) -> (i32, i32) {
    %c0_i32 = arith.constant 0 : i32
    %c0_i32_0 = arith.constant 0 : i32
    %c0_i32_1 = arith.constant 0 : i32
    return %c0_i32, %c0_i32_0 : i32, i32
  }
  func.func @transform_5(%arg0: i32, %arg1: i32) -> (i32, i32) {
    %c0_i32 = arith.constant 0 : i32
    %c0_i32_0 = arith.constant 0 : i32
    %c0_i32_1 = arith.constant 0 : i32
    return %c0_i32, %c0_i32_0 : i32, i32
  }
  func.func @transform_6(%arg0: i32, %arg1: i32) -> (i32, i32, i32) {
    %c0_i32 = arith.constant 0 : i32
    %c0_i32_0 = arith.constant 0 : i32
    return %arg0, %arg1, %c0_i32 : i32, i32, i32
  }
  func.func @transform_7(%arg0: i32, %arg1: i32) -> (i32, i32, i32) {
    %c0_i32 = arith.constant 0 : i32
    %c0_i32_0 = arith.constant 0 : i32
    return %arg0, %arg1, %c0_i32 : i32, i32, i32
  }
}

</mosaic_0001>

<llo_original>
// kernel: tpu_custom_call.1
$region0: #{tpu_custom_call.1}
  #allocation0 [shape = 'u32[]', space=smem, size = 0x4, offset = 0x4, fixed_abs, tag = 'smem constant byte address 0x4 - core index']
  #allocation1 [shape = 'u32[72,128]{1,0:T(1,128)}', space=vmem, size = 0x9000, scoped, tag = 'internal scratch']
  #allocation2 [shape = 'bf16[128,128]{1,0:T(8,128)(2,1)}', space=vmem, size = 0x8000, scoped, tag = 'scratch operand']
  #allocation3 [shape = 'bf16[128,128]{1,0:T(8,128)(2,1)}', space=vmem, size = 0x8000, scoped, tag = 'scratch operand']
  %s0 = inlined_call_operand.hbm [shape: bf16[2,256,128], index: 0, kind: input, shape index: {}]
  %s1 = inlined_call_operand.hbm [shape: bf16[2,128,128], index: 1, kind: input, shape index: {}]
  %s2 = inlined_call_operand.hbm [shape: bf16[3,128,128], index: 2, kind: input, shape index: {}]
  %s3 = inlined_call_operand.hbm [shape: bf16[2,128,128], index: 3, kind: input, shape index: {}]
  %s4 = inlined_call_operand.hbm [shape: bf16[128,128], index: 4, kind: input, shape index: {}]
  %s5 = inlined_call_operand.hbm [shape: f32[6,128], index: 5, kind: input, shape index: {}]
  %s6 = inlined_call_operand.hbm [shape: f32[2,256,128], index: 6, kind: output, shape index: {0}]
  %s7 = inlined_call_operand.hbm [shape: f32[2,256,128], index: 7, kind: output, shape index: {1}]
  %8 = xla_tuple %s6, %s7
  %s9 = sld [smem:[#allocation0]]
  $region93: #{tpu_custom_call.1} parent=0
    _
  %s11 = ssub.s32 1, %s9
  %s12 = scalar_select 0, %s11, %s9
  $region1: #{tpu_custom_call.1} parent=0
    #allocation4 [shape = 'u8[65536]{0}', space=vmem, size = 0x10000, scoped, tag = 'input window, operand 0']
    #allocation5 [shape = 's32[2]{0}', space=sflag, size = 0x8, scoped, tag = 'scoped memory for tpu_custom_call.1']
    #allocation6 [shape = 's32[2]{0}', space=sflag, size = 0x8, scoped, tag = 'scoped memory for tpu_custom_call.1']
    #allocation7 [shape = 'u8[65536]{0}', space=vmem, size = 0x10000, scoped, tag = 'input window, operand 1']
    #allocation8 [shape = 's32[2]{0}', space=sflag, size = 0x8, scoped, tag = 'scoped memory for tpu_custom_call.1']
    #allocation9 [shape = 'u8[98304]{0}', space=vmem, size = 0x18000, scoped, tag = 'input window, operand 2, single buffered']
    #allocation10 [shape = 'u8[65536]{0}', space=vmem, size = 0x10000, scoped, tag = 'input window, operand 3, single buffered']
    #allocation11 [shape = 's32[1]{0}', space=sflag, size = 0x4, scoped, tag = 'scoped memory for tpu_custom_call.1']
    #allocation12 [shape = 'u8[32768]{0}', space=vmem, size = 0x8000, scoped, tag = 'input window, operand 4, single buffered']
    #allocation13 [shape = 'u8[4096]{0}', space=vmem, size = 0x1000, scoped, tag = 'input window, operand 5, single buffered']
    #allocation14 [shape = 's32[1]{0}', space=sflag, size = 0x4, scoped, tag = 'scoped memory for tpu_custom_call.1']
    #allocation15 [shape = 'u8[131072]{0}', space=vmem, size = 0x20000, scoped, tag = 'output window, operand 0']
    #allocation16 [shape = 'u8[131072]{0}', space=vmem, size = 0x20000, scoped, tag = 'output window, operand 1']
    #allocation17 [shape = 's32[2]{0}', space=sflag, size = 0x8, scoped, tag = 'scoped memory for tpu_custom_call.1']
    %13 = vsyncpa [#allocation5], 0
    %s14 = scalar_lea.sflag [#allocation5], 1
    %15 = vsyncpa %s14, 0
    %16 = vsyncpa [#allocation8], 0
    %s17 = scalar_lea.sflag [#allocation8], 1
    %18 = vsyncpa %s17, 0
    %19 = vsyncpa [#allocation11], 0
    %20 = vsyncpa [#allocation14], 0
    %21 = vsyncpa [#allocation6], 0
    %s22 = scalar_lea.sflag [#allocation6], 1
    %23 = vsyncpa %s22, 0
    %24 = vsyncpa [#allocation17], 0
    %s25 = scalar_lea.sflag [#allocation17], 1
    %26 = vsyncpa %s25, 0
    loop: start=0, step=1, limit=6
    $region2: #{tpu_custom_call.1} parent=1 // loop_pre_header
      _
    $region3: #{tpu_custom_call.1} parent=1 // loop_header
      %s28 = sphi 0, %s32
      %p29 = scmp.ge.s32.totalorder %s28, 6
      %s35 = sphi 0, %s47
      %s36 = sphi 0, %s43
      %s37 = sphi 0, %s35
      %s38 = sphi 0, %s36
      %s39 = sphi 0, %s37
      %s40 = sphi 0, %s38
      %s52 = sphi 0, %s54
      %s55 = sphi 0, %s52
      %s56 = sphi 0, %s55
      %s72 = sphi 0, %s56
      %s78 = sphi 0, %s80
      %s81 = sphi 0, %s78
      %s82 = sphi 0, %s81
      %s98 = sphi 0, %s82
      %s102 = sphi 0, %s102
      %s104 = sphi 0, %s102
      %s105 = sphi 0, %s104
      %s119 = sphi 0, %s105
      %s123 = sphi 0, %s123
      %s125 = sphi 0, %s123
      %s126 = sphi 0, %s125
      %s140 = sphi 0, %s126
      %s144 = sphi 0, %s144
      %s146 = sphi 0, %s144
      %s147 = sphi 0, %s146
      %s161 = sphi 0, %s147
      %s165 = sphi 0, %s165
      %s167 = sphi 0, %s165
      %s168 = sphi 0, %s167
      %s182 = sphi 0, %s168
      %s190 = sphi 0, %s192
      %s193 = sphi 0, %s190
      %s194 = sphi 0, %s193
      %s210 = sphi 0, %s194
      %s218 = sphi 0, %s220
      %s221 = sphi 0, %s218
      %s222 = sphi 0, %s221
      %s238 = sphi 0, %s222
    $region4: #{tpu_custom_call.1} parent=1 // loop_header_branch
      %31 = sbr.rel (%p29) target = $region8
    $region5: #{tpu_custom_call.1} parent=1 // loop_body
      %s33 = ssub.s32 %s28, 1
      %s34 = ssub.s32 %s28, 2
      %s41 = sadd.s32 1, %s36
      %p42 = scmp.ge.s32.totalorder %s41, 2
      %s43 = scalar_select %p42, 0, %s41
      %s44 = sadd.s32 1, %s35
      %s45 = scalar_select %p42, %s44, %s35
      %p46 = scmp.ge.s32.totalorder %s45, 2
      %s47 = scalar_select %p46, 0, %s45
      %s48 = ssub.s32 %s35, %s47
      %s49 = ssub.s32 %s36, %s43
      %s50 = sor.u32 %s48, %s49
      %p51 = scmp.eq.s32.totalorder %s50, 0
      %s53 = sadd.s32 %s52, 1
      %s54 = scalar_select %p51, %s52, %s53
      %p57 = pneg %p51
      %p58 = scmp.eq.s32.totalorder %s28, 3
      %p59 = por %p57, %p58
      %p60 = scmp.ne.s32.totalorder %s52, %s55
      %p61 = scmp.eq.s32.totalorder %s28, 0
      %p62 = por %p60, %p61
      %p63 = scmp.ne.s32.totalorder %s52, %s55
      %p64 = scmp.eq.s32.totalorder %s33, 3
      %p65 = por %p63, %p64
      %p66 = scmp.ne.s32.totalorder %s55, %s56
      %p67 = scmp.eq.s32.totalorder %s33, 0
      %p68 = por %p66, %p67
      %p69 = scmp.ne.s32.totalorder %s55, %s56
      %p70 = scmp.eq.s32.totalorder %s34, 3
      %p71 = por %p69, %p70
      %p73 = scmp.ne.s32.totalorder %s56, %s72
      %p74 = scmp.eq.s32.totalorder %s34, 0
      %p75 = por %p73, %p74
      %s76 = ssub.s32 %s35, %s47
      %p77 = scmp.eq.s32.totalorder %s76, 0
      %s79 = sadd.s32 %s78, 1
      %s80 = scalar_select %p77, %s78, %s79
      %p83 = pneg %p77
      %p84 = scmp.eq.s32.totalorder %s28, 3
      %p85 = por %p83, %p84
      %p86 = scmp.ne.s32.totalorder %s78, %s81
      %p87 = scmp.eq.s32.totalorder %s28, 0
      %p88 = por %p86, %p87
      %p89 = scmp.ne.s32.totalorder %s78, %s81
      %p90 = scmp.eq.s32.totalorder %s33, 3
      %p91 = por %p89, %p90
      %p92 = scmp.ne.s32.totalorder %s81, %s82
      %p93 = scmp.eq.s32.totalorder %s33, 0
      %p94 = por %p92, %p93
      %p95 = scmp.ne.s32.totalorder %s81, %s82
      %p96 = scmp.eq.s32.totalorder %s34, 3
      %p97 = por %p95, %p96
      %p99 = scmp.ne.s32.totalorder %s82, %s98
      %p100 = scmp.eq.s32.totalorder %s34, 0
      %p101 = por %p99, %p100
      %s103 = sadd.s32 %s102, 1
      %p106 = scmp.eq.s32.totalorder %s28, 3
      %p107 = scmp.ne.s32.totalorder %s102, %s104
      %p108 = scmp.eq.s32.totalorder %s28, 0
      %p109 = por %p107, %p108
      %p110 = scmp.ne.s32.totalorder %s102, %s104
      %p111 = scmp.eq.s32.totalorder %s33, 3
      %p112 = por %p110, %p111
      %p113 = scmp.ne.s32.totalorder %s104, %s105
      %p114 = scmp.eq.s32.totalorder %s33, 0
      %p115 = por %p113, %p114
      %p116 = scmp.ne.s32.totalorder %s104, %s105
      %p117 = scmp.eq.s32.totalorder %s34, 3
      %p118 = por %p116, %p117
      %p120 = scmp.ne.s32.totalorder %s105, %s119
      %p121 = scmp.eq.s32.totalorder %s34, 0
      %p122 = por %p120, %p121
      %s124 = sadd.s32 %s123, 1
      %p127 = scmp.eq.s32.totalorder %s28, 3
      %p128 = scmp.ne.s32.totalorder %s123, %s125
      %p129 = scmp.eq.s32.totalorder %s28, 0
      %p130 = por %p128, %p129
      %p131 = scmp.ne.s32.totalorder %s123, %s125
      %p132 = scmp.eq.s32.totalorder %s33, 3
      %p133 = por %p131, %p132
      %p134 = scmp.ne.s32.totalorder %s125, %s126
      %p135 = scmp.eq.s32.totalorder %s33, 0
      %p136 = por %p134, %p135
      %p137 = scmp.ne.s32.totalorder %s125, %s126
      %p138 = scmp.eq.s32.totalorder %s34, 3
      %p139 = por %p137, %p138
      %p141 = scmp.ne.s32.totalorder %s126, %s140
      %p142 = scmp.eq.s32.totalorder %s34, 0
      %p143 = por %p141, %p142
      %s145 = sadd.s32 %s144, 1
      %p148 = scmp.eq.s32.totalorder %s28, 3
      %p149 = scmp.ne.s32.totalorder %s144, %s146
      %p150 = scmp.eq.s32.totalorder %s28, 0
      %p151 = por %p149, %p150
      %p152 = scmp.ne.s32.totalorder %s144, %s146
      %p153 = scmp.eq.s32.totalorder %s33, 3
      %p154 = por %p152, %p153
      %p155 = scmp.ne.s32.totalorder %s146, %s147
      %p156 = scmp.eq.s32.totalorder %s33, 0
      %p157 = por %p155, %p156
      %p158 = scmp.ne.s32.totalorder %s146, %s147
      %p159 = scmp.eq.s32.totalorder %s34, 3
      %p160 = por %p158, %p159
      %p162 = scmp.ne.s32.totalorder %s147, %s161
      %p163 = scmp.eq.s32.totalorder %s34, 0
      %p164 = por %p162, %p163
      %s166 = sadd.s32 %s165, 1
      %p169 = scmp.eq.s32.totalorder %s28, 3
      %p170 = scmp.ne.s32.totalorder %s165, %s167
      %p171 = scmp.eq.s32.totalorder %s28, 0
      %p172 = por %p170, %p171
      %p173 = scmp.ne.s32.totalorder %s165, %s167
      %p174 = scmp.eq.s32.totalorder %s33, 3
      %p175 = por %p173, %p174
      %p176 = scmp.ne.s32.totalorder %s167, %s168
      %p177 = scmp.eq.s32.totalorder %s33, 0
      %p178 = por %p176, %p177
      %p179 = scmp.ne.s32.totalorder %s167, %s168
      %p180 = scmp.eq.s32.totalorder %s34, 3
      %p181 = por %p179, %p180
      %p183 = scmp.ne.s32.totalorder %s168, %s182
      %p184 = scmp.eq.s32.totalorder %s34, 0
      %p185 = por %p183, %p184
      %s186 = ssub.s32 %s35, %s47
      %s187 = ssub.s32 %s36, %s43
      %s188 = sor.u32 %s186, %s187
      %p189 = scmp.eq.s32.totalorder %s188, 0
      %s191 = sadd.s32 %s190, 1
      %s192 = scalar_select %p189, %s190, %s191
      %p195 = pneg %p189
      %p196 = scmp.eq.s32.totalorder %s28, 3
      %p197 = por %p195, %p196
      %p198 = scmp.ne.s32.totalorder %s190, %s193
      %p199 = scmp.eq.s32.totalorder %s28, 0
      %p200 = por %p198, %p199
      %p201 = scmp.ne.s32.totalorder %s190, %s193
      %p202 = scmp.eq.s32.totalorder %s33, 3
      %p203 = por %p201, %p202
      %p204 = scmp.ne.s32.totalorder %s193, %s194
      %p205 = scmp.eq.s32.totalorder %s33, 0
      %p206 = por %p204, %p205
      %p207 = scmp.ne.s32.totalorder %s193, %s194
      %p208 = scmp.eq.s32.totalorder %s34, 3
      %p209 = por %p207, %p208
      %p211 = scmp.ne.s32.totalorder %s194, %s210
      %p212 = scmp.eq.s32.totalorder %s34, 0
      %p213 = por %p211, %p212
      %s214 = ssub.s32 %s35, %s47
      %s215 = ssub.s32 %s36, %s43
      %s216 = sor.u32 %s214, %s215
      %p217 = scmp.eq.s32.totalorder %s216, 0
      %s219 = sadd.s32 %s218, 1
      %s220 = scalar_select %p217, %s218, %s219
      %p223 = pneg %p217
      %p224 = scmp.eq.s32.totalorder %s28, 3
      %p225 = por %p223, %p224
      %p226 = scmp.ne.s32.totalorder %s218, %s221
      %p227 = scmp.eq.s32.totalorder %s28, 0
      %p228 = por %p226, %p227
      %p229 = scmp.ne.s32.totalorder %s218, %s221
      %p230 = scmp.eq.s32.totalorder %s33, 3
      %p231 = por %p229, %p230
      %p232 = scmp.ne.s32.totalorder %s221, %s222
      %p233 = scmp.eq.s32.totalorder %s33, 0
      %p234 = por %p232, %p233
      %p235 = scmp.ne.s32.totalorder %s221, %s222
      %p236 = scmp.eq.s32.totalorder %s34, 3
      %p237 = por %p235, %p236
      %p239 = scmp.ne.s32.totalorder %s222, %s238
      %p240 = scmp.eq.s32.totalorder %s34, 0
      %p241 = por %p239, %p240
      %p242 = scmp.le.s32.totalorder 1, %s28
      %p243 = scmp.lt.s32.totalorder %s28, 5
      %p244 = pnand %p242, %p243
      %p245 = pneg %p244
      // Predicated region
      $region9: #{tpu_custom_call.1} parent=5 // pred_check
        _
      $region10: #{tpu_custom_call.1} parent=5 // pred_check_branch
        %247 = sbr.rel (%p244) target = $region12
      $region11: #{tpu_custom_call.1} parent=5 // pred_region
        %s248 = ssub.s32 %s28, 1
        // Predicated region
        $region13: #{tpu_custom_call.1} parent=11 // pred_check
          %p249 = pneg %p115
        $region14: #{tpu_custom_call.1} parent=11 // pred_check_branch
          %251 = sbr.rel (%p249) target = $region16
        $region15: #{tpu_custom_call.1} parent=11 // pred_region
          %253 = vsyncadd [#allocation8], 0
          %s254 = sshll.u32 %s2, 4
          %s255 = int_to_ptr.hbm [resolvable:$true] %s254
          %s256 = sshll.u32 [#allocation9], 4
          %s257 = int_to_ptr.vmem [resolvable:$true] %s256
          %262 = dma.hbm_to_vmem [thread:$0]  %s255, 3072, %s257, [#allocation8], 64, 64, 4
        $region16: #{tpu_custom_call.1} parent=11 // pred_fallthru
          _
        // Predicated region
        $region17: #{tpu_custom_call.1} parent=11 // pred_check
          %p263 = pneg %p136
        $region18: #{tpu_custom_call.1} parent=11 // pred_check_branch
          %265 = sbr.rel (%p263) target = $region20
        $region19: #{tpu_custom_call.1} parent=11 // pred_region
          %267 = vsyncadd [#allocation11], 0
          %s268 = sshll.u32 %s3, 4
          %s269 = int_to_ptr.hbm [resolvable:$true] %s268
          %s270 = sshll.u32 [#allocation10], 4
          %s271 = int_to_ptr.vmem [resolvable:$true] %s270
          %276 = dma.hbm_to_vmem [thread:$0]  %s269, 2048, %s271, [#allocation11], 64, 64, 4
        $region20: #{tpu_custom_call.1} parent=11 // pred_fallthru
          _
        // Predicated region
        $region21: #{tpu_custom_call.1} parent=11 // pred_check
          %p277 = pneg %p157
        $region22: #{tpu_custom_call.1} parent=11 // pred_check_branch
          %279 = sbr.rel (%p277) target = $region24
        $region23: #{tpu_custom_call.1} parent=11 // pred_region
          %281 = vsyncadd [#allocation11], 0
          %s282 = sshll.u32 %s4, 4
          %s283 = int_to_ptr.hbm [resolvable:$true] %s282
          %s284 = sshll.u32 [#allocation12], 4
          %s285 = int_to_ptr.vmem [resolvable:$true] %s284
          %290 = dma.hbm_to_vmem [thread:$0]  %s283, 1024, %s285, [#allocation11], 64, 64, 4
        $region24: #{tpu_custom_call.1} parent=11 // pred_fallthru
          _
        // Predicated region
        $region25: #{tpu_custom_call.1} parent=11 // pred_check
          %p291 = pneg %p178
        $region26: #{tpu_custom_call.1} parent=11 // pred_check_branch
          %293 = sbr.rel (%p291) target = $region28
        $region27: #{tpu_custom_call.1} parent=11 // pred_region
          %295 = vsyncadd [#allocation14], 0
          %s297 = sshll.u32 %s5, 4
          %s298 = int_to_ptr.hbm [resolvable:$true] %s297
          %s299 = sshll.u32 [#allocation13], 4
          %s300 = int_to_ptr.vmem [resolvable:$true] %s299
          %302 = dma.hbm_to_vmem [thread:$0]  %s298, 128, %s300, [#allocation14]
        $region28: #{tpu_custom_call.1} parent=11 // pred_fallthru
          _
      $region12: #{tpu_custom_call.1} parent=5 // pred_fallthru
        _
      %p303 = scmp.lt.s32.totalorder %s28, 4
      // Predicated region
      $region29: #{tpu_custom_call.1} parent=5 // pred_check
        %p304 = pneg %p303
      $region30: #{tpu_custom_call.1} parent=5 // pred_check_branch
        %306 = sbr.rel (%p304) target = $region32
      $region31: #{tpu_custom_call.1} parent=5 // pred_region
        // Predicated region
        $region33: #{tpu_custom_call.1} parent=31 // pred_check
          %p307 = pneg %p62
        $region34: #{tpu_custom_call.1} parent=31 // pred_check_branch
          %309 = sbr.rel (%p307) target = $region36
        $region35: #{tpu_custom_call.1} parent=31 // pred_region
          %s310 = sand.u32 %s52, 1
          %s311 = scalar_lea.sflag [#allocation5], %s310
          %s312 = sand.u32 %s52, 1
          %s313 = smul.addr %s312, 64
          %s314 = scalar_lea.vmem [#allocation4], %s313
          %s315 = smul.u32 16, %s36
          %317 = vsyncadd %s311, 0
          %s318 = smul.addr %s35, 32
          %s319 = sadd.s32 %s315, %s318
          %s320 = smul.addr %s319, 4
          %s321 = scalar_lea.hbm %s0, %s320
          %s322 = sshll.u32 %s321, 4
          %s323 = int_to_ptr.hbm [resolvable:$true] %s322
          %s324 = sshll.u32 %s314, 4
          %s325 = int_to_ptr.vmem [resolvable:$true] %s324
          %330 = dma.hbm_to_vmem [thread:$0]  %s323, 1024, %s325, %s311, 64, 64, 4
        $region36: #{tpu_custom_call.1} parent=31 // pred_fallthru
          _
        // Predicated region
        $region37: #{tpu_custom_call.1} parent=31 // pred_check
          %p331 = pneg %p88
        $region38: #{tpu_custom_call.1} parent=31 // pred_check_branch
          %333 = sbr.rel (%p331) target = $region40
        $region39: #{tpu_custom_call.1} parent=31 // pred_region
          %s334 = sand.u32 %s28, 1
          %s335 = scalar_lea.sflag [#allocation8], %s334
          %s336 = sand.u32 %s78, 1
          %s337 = smul.addr %s336, 64
          %s338 = scalar_lea.vmem [#allocation7], %s337
          %340 = vsyncadd %s335, 0
          %s341 = smul.addr %s35, 16
          %s342 = smul.addr %s341, 4
          %s343 = scalar_lea.hbm %s1, %s342
          %s344 = sshll.u32 %s343, 4
          %s345 = int_to_ptr.hbm [resolvable:$true] %s344
          %s346 = sshll.u32 %s338, 4
          %s347 = int_to_ptr.vmem [resolvable:$true] %s346
          %352 = dma.hbm_to_vmem [thread:$0]  %s345, 1024, %s347, %s335, 64, 64, 4
        $region40: #{tpu_custom_call.1} parent=31 // pred_fallthru
          _
      $region32: #{tpu_custom_call.1} parent=5 // pred_fallthru
        _
      %p353 = scmp.le.s32.totalorder 1, %s28
      %p354 = scmp.lt.s32.totalorder %s28, 5
      %p355 = pnand %p353, %p354
      %p356 = pneg %p355
      // Predicated region
      $region41: #{tpu_custom_call.1} parent=5 // pred_check
        _
      $region42: #{tpu_custom_call.1} parent=5 // pred_check_branch
        %358 = sbr.rel (%p355) target = $region44
      $region43: #{tpu_custom_call.1} parent=5 // pred_region
        %s359 = ssub.s32 %s28, 1
        %s360 = sand.u32 %s55, 1
        %s361 = scalar_lea.sflag [#allocation5], %s360
        %s362 = sand.u32 %s55, 1
        %s363 = smul.addr %s362, 64
        %s364 = scalar_lea.vmem [#allocation4], %s363
        // Predicated region
        $region45: #{tpu_custom_call.1} parent=43 // pred_check
          %p365 = pneg %p68
        $region46: #{tpu_custom_call.1} parent=43 // pred_check_branch
          %367 = sbr.rel (%p365) target = $region48
        $region47: #{tpu_custom_call.1} parent=43 // pred_region
          %369 = dma.done %s361, 1024
        $region48: #{tpu_custom_call.1} parent=43 // pred_fallthru
          _
        %s370 = sand.u32 %s33, 1
        %s371 = scalar_lea.sflag [#allocation8], %s370
        %s372 = sand.u32 %s81, 1
        %s373 = smul.addr %s372, 64
        %s374 = scalar_lea.vmem [#allocation7], %s373
        // Predicated region
        $region49: #{tpu_custom_call.1} parent=43 // pred_check
          %p375 = pneg %p94
        $region50: #{tpu_custom_call.1} parent=43 // pred_check_branch
          %377 = sbr.rel (%p375) target = $region52
        $region51: #{tpu_custom_call.1} parent=43 // pred_region
          %379 = dma.done %s371, 1024
        $region52: #{tpu_custom_call.1} parent=43 // pred_fallthru
          _
        // Predicated region
        $region53: #{tpu_custom_call.1} parent=43 // pred_check
          %p380 = pneg %p115
        $region54: #{tpu_custom_call.1} parent=43 // pred_check_branch
          %382 = sbr.rel (%p380) target = $region56
        $region55: #{tpu_custom_call.1} parent=43 // pred_region
          %384 = dma.done [#allocation8], 3072
        $region56: #{tpu_custom_call.1} parent=43 // pred_fallthru
          _
        // Predicated region
        $region57: #{tpu_custom_call.1} parent=43 // pred_check
          %p385 = pneg %p136
        $region58: #{tpu_custom_call.1} parent=43 // pred_check_branch
          %387 = sbr.rel (%p385) target = $region60
        $region59: #{tpu_custom_call.1} parent=43 // pred_region
          %389 = dma.done [#allocation11], 2048
        $region60: #{tpu_custom_call.1} parent=43 // pred_fallthru
          _
        // Predicated region
        $region61: #{tpu_custom_call.1} parent=43 // pred_check
          %p390 = pneg %p157
        $region62: #{tpu_custom_call.1} parent=43 // pred_check_branch
          %392 = sbr.rel (%p390) target = $region64
        $region63: #{tpu_custom_call.1} parent=43 // pred_region
          %394 = dma.done [#allocation11], 1024
        $region64: #{tpu_custom_call.1} parent=43 // pred_fallthru
          _
        // Predicated region
        $region65: #{tpu_custom_call.1} parent=43 // pred_check
          %p395 = pneg %p178
        $region66: #{tpu_custom_call.1} parent=43 // pred_check_branch
          %397 = sbr.rel (%p395) target = $region68
        $region67: #{tpu_custom_call.1} parent=43 // pred_region
          %399 = dma.done [#allocation14], 128
        $region68: #{tpu_custom_call.1} parent=43 // pred_fallthru
          _
        %s400 = sand.u32 %s55, 1
        %s401 = scalar_lea.sflag [#allocation5], %s400
        %s402 = sand.u32 %s55, 1
        %s403 = smul.addr %s402, 64
        %s404 = scalar_lea.vmem [#allocation4], %s403
        %p405 = pneg %p68
        %p406 = pneg %p65
        %s407 = sand.u32 %s33, 1
        %s408 = scalar_lea.sflag [#allocation8], %s407
        %s409 = sand.u32 %s81, 1
        %s410 = smul.addr %s409, 64
        %s411 = scalar_lea.vmem [#allocation7], %s410
        %p412 = pneg %p94
        %p413 = pneg %p91
        %p414 = pneg %p115
        %p415 = pneg %p112
        %p416 = pneg %p136
        %p417 = pneg %p133
        %p418 = pneg %p157
        %p419 = pneg %p154
        %p420 = pneg %p178
        %p421 = pneg %p175
        %p422 = pneg %p206
        %p423 = pneg %p203
        %s424 = sand.u32 %s193, 1
        %s425 = scalar_lea.sflag [#allocation6], %s424
        %s426 = sand.u32 %s193, 1
        %s427 = smul.addr %s426, 128
        %s428 = scalar_lea.vmem [#allocation15], %s427
        %p429 = pneg %p234
        %p430 = pneg %p231
        %s431 = sand.u32 %s221, 1
        %s432 = scalar_lea.sflag [#allocation17], %s431
        %s433 = sand.u32 %s221, 1
        %s434 = smul.addr %s433, 128
        %s435 = scalar_lea.vmem [#allocation16], %s434
        %s436 = smul.u32 16, %s38
        %s437 = smul.u32 16, %s38
        %s438 = smul.u32 16, %s38
        %p439 = scmp.eq.s32.totalorder %s38, 0
        // Predicated region
        $region69: #{tpu_custom_call.1} parent=43 // pred_check
          %p440 = pneg %p439
        $region70: #{tpu_custom_call.1} parent=43 // pred_check_branch
          %442 = sbr.rel (%p440) target = $region72
        $region71: #{tpu_custom_call.1} parent=43 // pred_region
          %v443 = vld [vmem:[%s374] sm:$0xf]
          %v444 = vld [vmem:[%s374 + $0x4] sm:$0xf]
          %v445 = vld [vmem:[%s374 + $0x8] sm:$0xf]
          %v446 = vld [vmem:[%s374 + $0xc] sm:$0xf]
          %v447 = vld [vmem:[%s374 + $0x10] sm:$0xf]
          %v448 = vld [vmem:[%s374 + $0x14] sm:$0xf]
          %v449 = vld [vmem:[%s374 + $0x18] sm:$0xf]
          %v450 = vld [vmem:[%s374 + $0x1c] sm:$0xf]
          %v451 = vld [vmem:[%s374 + $0x20] sm:$0xf]
          %v452 = vld [vmem:[%s374 + $0x24] sm:$0xf]
          %v453 = vld [vmem:[%s374 + $0x28] sm:$0xf]
          %v454 = vld [vmem:[%s374 + $0x2c] sm:$0xf]
          %v455 = vld [vmem:[%s374 + $0x30] sm:$0xf]
          %v456 = vld [vmem:[%s374 + $0x34] sm:$0xf]
          %v457 = vld [vmem:[%s374 + $0x38] sm:$0xf]
          %v458 = vld [vmem:[%s374 + $0x3c] sm:$0xf]
          %s459 = scalar_lea.vmem [#allocation9], 64
          %v460 = vld [vmem:[%s459] sm:$0xf]
          %v461 = vld [vmem:[%s459 + $0x4] sm:$0xf]
          %v462 = vld [vmem:[%s459 + $0x8] sm:$0xf]
          %v463 = vld [vmem:[%s459 + $0xc] sm:$0xf]
          %v464 = vld [vmem:[%s459 + $0x10] sm:$0xf]
          %v465 = vld [vmem:[%s459 + $0x14] sm:$0xf]
          %v466 = vld [vmem:[%s459 + $0x18] sm:$0xf]
          %v467 = vld [vmem:[%s459 + $0x1c] sm:$0xf]
          %v468 = vld [vmem:[%s459 + $0x20] sm:$0xf]
          %v469 = vld [vmem:[%s459 + $0x24] sm:$0xf]
          %v470 = vld [vmem:[%s459 + $0x28] sm:$0xf]
          %v471 = vld [vmem:[%s459 + $0x2c] sm:$0xf]
          %v472 = vld [vmem:[%s459 + $0x30] sm:$0xf]
          %v473 = vld [vmem:[%s459 + $0x34] sm:$0xf]
          %v474 = vld [vmem:[%s459 + $0x38] sm:$0xf]
          %v475 = vld [vmem:[%s459 + $0x3c] sm:$0xf]
          %v476 = vld [vmem:[#allocation13 + $0x2] sm:$0x1]
          %v477 = vperm.slane %v476, 0
          %v494 = vunpack.c.l.b16 %v443
          %v495 = vunpack.c.l.b16 %v444
          %v496 = vunpack.c.l.b16 %v445
          %v497 = vunpack.c.l.b16 %v446
          %v498 = vunpack.c.l.b16 %v447
          %v499 = vunpack.c.l.b16 %v448
          %v500 = vunpack.c.l.b16 %v449
          %v501 = vunpack.c.l.b16 %v450
          %v502 = vunpack.c.l.b16 %v451
          %v503 = vunpack.c.l.b16 %v452
          %v504 = vunpack.c.l.b16 %v453
          %v505 = vunpack.c.l.b16 %v454
          %v506 = vunpack.c.l.b16 %v455
          %v507 = vunpack.c.l.b16 %v456
          %v508 = vunpack.c.l.b16 %v457
          %v509 = vunpack.c.l.b16 %v458
          %v510 = vpack.c.b16 %v495, %v494
          %v511 = vpack.c.b16 %v497, %v496
          %v512 = vpack.c.b16 %v499, %v498
          %v513 = vpack.c.b16 %v501, %v500
          %v514 = vpack.c.b16 %v503, %v502
          %v515 = vpack.c.b16 %v505, %v504
          %v516 = vpack.c.b16 %v507, %v506
          %v517 = vpack.c.b16 %v509, %v508
          %v542 = vunpack.c.l.b16 %v460
          %v543 = vunpack.c.l.b16 %v461
          %v544 = vunpack.c.l.b16 %v462
          %v545 = vunpack.c.l.b16 %v463
          %v546 = vunpack.c.l.b16 %v464
          %v547 = vunpack.c.l.b16 %v465
          %v548 = vunpack.c.l.b16 %v466
          %v549 = vunpack.c.l.b16 %v467
          %v550 = vunpack.c.l.b16 %v468
          %v551 = vunpack.c.l.b16 %v469
          %v552 = vunpack.c.l.b16 %v470
          %v553 = vunpack.c.l.b16 %v471
          %v554 = vunpack.c.l.b16 %v472
          %v555 = vunpack.c.l.b16 %v473
          %v556 = vunpack.c.l.b16 %v474
          %v557 = vunpack.c.l.b16 %v475
          %v558 = vpack.c.b16 %v543, %v542
          %v559 = vpack.c.b16 %v545, %v544
          %v560 = vpack.c.b16 %v547, %v546
          %v561 = vpack.c.b16 %v549, %v548
          %v562 = vpack.c.b16 %v551, %v550
          %v563 = vpack.c.b16 %v553, %v552
          %v564 = vpack.c.b16 %v555, %v554
          %v565 = vpack.c.b16 %v557, %v556
          %574 = vmatpush.bf16.msra.mxu0 %v565
          %575 = vmatpush.bf16.msra.mxu0 %v564
          %576 = vmatpush.bf16.msra.mxu0 %v563
          %577 = vmatpush.bf16.msra.mxu0 %v562
          %578 = vmatpush.bf16.msra.mxu0 %v561
          %579 = vmatpush.bf16.msra.mxu0 %v560
          %580 = vmatpush.bf16.msra.mxu0 %v559
          %581 = vmatpush.bf16.msra.mxu0 %v558
          %582 = vmatmul.bf16.gmra.mxu0 %v510
          %v583 = vpop.f32.mrf.mxu0
          %v584 = vadd.f32 %v477, %v583
          %v585 = vpop.f32.mrf.mxu0
          %v586 = vadd.f32 %v477, %v585
          %587 = vmatmul.bf16.gmra.mxu0 %v511
          %v588 = vpop.f32.mrf.mxu0
          %v589 = vadd.f32 %v477, %v588
          %v590 = vpop.f32.mrf.mxu0
          %v591 = vadd.f32 %v477, %v590
          %592 = vmatmul.bf16.gmra.mxu0 %v512
          %v593 = vpop.f32.mrf.mxu0
          %v594 = vadd.f32 %v477, %v593
          %v595 = vpop.f32.mrf.mxu0
          %v596 = vadd.f32 %v477, %v595
          %597 = vmatmul.bf16.gmra.mxu0 %v513
          %v598 = vpop.f32.mrf.mxu0
          %v599 = vadd.f32 %v477, %v598
          %v600 = vpop.f32.mrf.mxu0
          %v601 = vadd.f32 %v477, %v600
          %602 = vmatmul.bf16.gmra.mxu0 %v514
          %v603 = vpop.f32.mrf.mxu0
          %v604 = vadd.f32 %v477, %v603
          %v605 = vpop.f32.mrf.mxu0
          %v606 = vadd.f32 %v477, %v605
          %607 = vmatmul.bf16.gmra.mxu0 %v515
          %v608 = vpop.f32.mrf.mxu0
          %v609 = vadd.f32 %v477, %v608
          %v610 = vpop.f32.mrf.mxu0
          %v611 = vadd.f32 %v477, %v610
          %612 = vmatmul.bf16.gmra.mxu0 %v516
          %v613 = vpop.f32.mrf.mxu0
          %v614 = vadd.f32 %v477, %v613
          %v615 = vpop.f32.mrf.mxu0
          %v616 = vadd.f32 %v477, %v615
          %617 = vmatmul.bf16.gmra.mxu0 %v517
          %v618 = vpop.f32.mrf.mxu0
          %v619 = vadd.f32 %v477, %v618
          %v620 = vpop.f32.mrf.mxu0
          %v621 = vadd.f32 %v477, %v620
          %622 = vdwg.mxu0
          %v623 = vmax.f32 %v584, 0.0
          %v624 = vmax.f32 %v586, 0.0
          %v625 = vmax.f32 %v589, 0.0
          %v626 = vmax.f32 %v591, 0.0
          %v627 = vmax.f32 %v594, 0.0
          %v628 = vmax.f32 %v596, 0.0
          %v629 = vmax.f32 %v599, 0.0
          %v630 = vmax.f32 %v601, 0.0
          %v631 = vmax.f32 %v604, 0.0
          %v632 = vmax.f32 %v606, 0.0
          %v633 = vmax.f32 %v609, 0.0
          %v634 = vmax.f32 %v611, 0.0
          %v635 = vmax.f32 %v614, 0.0
          %v636 = vmax.f32 %v616, 0.0
          %v637 = vmax.f32 %v619, 0.0
          %v638 = vmax.f32 %v621, 0.0
          %s639 = scalar_lea.vmem [#allocation10], 64
          %v640 = vld [vmem:[%s639] sm:$0xf]
          %v641 = vld [vmem:[%s639 + $0x4] sm:$0xf]
          %v642 = vld [vmem:[%s639 + $0x8] sm:$0xf]
          %v643 = vld [vmem:[%s639 + $0xc] sm:$0xf]
          %v644 = vld [vmem:[%s639 + $0x10] sm:$0xf]
          %v645 = vld [vmem:[%s639 + $0x14] sm:$0xf]
          %v646 = vld [vmem:[%s639 + $0x18] sm:$0xf]
          %v647 = vld [vmem:[%s639 + $0x1c] sm:$0xf]
          %v648 = vld [vmem:[%s639 + $0x20] sm:$0xf]
          %v649 = vld [vmem:[%s639 + $0x24] sm:$0xf]
          %v650 = vld [vmem:[%s639 + $0x28] sm:$0xf]
          %v651 = vld [vmem:[%s639 + $0x2c] sm:$0xf]
          %v652 = vld [vmem:[%s639 + $0x30] sm:$0xf]
          %v653 = vld [vmem:[%s639 + $0x34] sm:$0xf]
          %v654 = vld [vmem:[%s639 + $0x38] sm:$0xf]
          %v655 = vld [vmem:[%s639 + $0x3c] sm:$0xf]
          %v656 = vld [vmem:[#allocation13 + $0x3] sm:$0x1]
          %v657 = vpack.c.bf16 %v624, %v623
          %v658 = vpack.c.bf16 %v626, %v625
          %v659 = vpack.c.bf16 %v628, %v627
          %v660 = vpack.c.bf16 %v630, %v629
          %v661 = vpack.c.bf16 %v632, %v631
          %v662 = vpack.c.bf16 %v634, %v633
          %v663 = vpack.c.bf16 %v636, %v635
          %v664 = vpack.c.bf16 %v638, %v637
          %v665 = vperm.slane %v656, 0
          %v682 = vunpack.c.l.b16 %v640
          %v683 = vunpack.c.l.b16 %v641
          %v684 = vunpack.c.l.b16 %v642
          %v685 = vunpack.c.l.b16 %v643
          %v686 = vunpack.c.l.b16 %v644
          %v687 = vunpack.c.l.b16 %v645
          %v688 = vunpack.c.l.b16 %v646
          %v689 = vunpack.c.l.b16 %v647
          %v690 = vunpack.c.l.b16 %v648
          %v691 = vunpack.c.l.b16 %v649
          %v692 = vunpack.c.l.b16 %v650
          %v693 = vunpack.c.l.b16 %v651
          %v694 = vunpack.c.l.b16 %v652
          %v695 = vunpack.c.l.b16 %v653
          %v696 = vunpack.c.l.b16 %v654
          %v697 = vunpack.c.l.b16 %v655
          %v698 = vpack.c.b16 %v683, %v682
          %v699 = vpack.c.b16 %v685, %v684
          %v700 = vpack.c.b16 %v687, %v686
          %v701 = vpack.c.b16 %v689, %v688
          %v702 = vpack.c.b16 %v691, %v690
          %v703 = vpack.c.b16 %v693, %v692
          %v704 = vpack.c.b16 %v695, %v694
          %v705 = vpack.c.b16 %v697, %v696
          %714 = vmatpush.bf16.msra.mxu0 %v705
          %715 = vmatpush.bf16.msra.mxu0 %v704
          %716 = vmatpush.bf16.msra.mxu0 %v703
          %717 = vmatpush.bf16.msra.mxu0 %v702
          %718 = vmatpush.bf16.msra.mxu0 %v701
          %719 = vmatpush.bf16.msra.mxu0 %v700
          %720 = vmatpush.bf16.msra.mxu0 %v699
          %721 = vmatpush.bf16.msra.mxu0 %v698
          %722 = vmatmul.bf16.gmra.mxu0 %v657
          %v723 = vpop.f32.mrf.mxu0
          %v724 = vadd.f32 %v665, %v723
          %v725 = vpop.f32.mrf.mxu0
          %v726 = vadd.f32 %v665, %v725
          %727 = vmatmul.bf16.gmra.mxu0 %v658
          %v728 = vpop.f32.mrf.mxu0
          %v729 = vadd.f32 %v665, %v728
          %v730 = vpop.f32.mrf.mxu0
          %v731 = vadd.f32 %v665, %v730
          %732 = vmatmul.bf16.gmra.mxu0 %v659
          %v733 = vpop.f32.mrf.mxu0
          %v734 = vadd.f32 %v665, %v733
          %v735 = vpop.f32.mrf.mxu0
          %v736 = vadd.f32 %v665, %v735
          %737 = vmatmul.bf16.gmra.mxu0 %v660
          %v738 = vpop.f32.mrf.mxu0
          %v739 = vadd.f32 %v665, %v738
          %v740 = vpop.f32.mrf.mxu0
          %v741 = vadd.f32 %v665, %v740
          %742 = vmatmul.bf16.gmra.mxu0 %v661
          %v743 = vpop.f32.mrf.mxu0
          %v744 = vadd.f32 %v665, %v743
          %v745 = vpop.f32.mrf.mxu0
          %v746 = vadd.f32 %v665, %v745
          %747 = vmatmul.bf16.gmra.mxu0 %v662
          %v748 = vpop.f32.mrf.mxu0
          %v749 = vadd.f32 %v665, %v748
          %v750 = vpop.f32.mrf.mxu0
          %v751 = vadd.f32 %v665, %v750
          %752 = vmatmul.bf16.gmra.mxu0 %v663
          %v753 = vpop.f32.mrf.mxu0
          %v754 = vadd.f32 %v665, %v753
          %v755 = vpop.f32.mrf.mxu0
          %v756 = vadd.f32 %v665, %v755
          %757 = vmatmul.bf16.gmra.mxu0 %v664
          %v758 = vpop.f32.mrf.mxu0
          %v759 = vadd.f32 %v665, %v758
          %v760 = vpop.f32.mrf.mxu0
          %v761 = vadd.f32 %v665, %v760
          %762 = vdwg.mxu0
          %v763 = vmax.f32 %v724, 0.0
          %v764 = vmax.f32 %v726, 0.0
          %v765 = vmax.f32 %v729, 0.0
          %v766 = vmax.f32 %v731, 0.0
          %v767 = vmax.f32 %v734, 0.0
          %v768 = vmax.f32 %v736, 0.0
          %v769 = vmax.f32 %v739, 0.0
          %v770 = vmax.f32 %v741, 0.0
          %v771 = vmax.f32 %v744, 0.0
          %v772 = vmax.f32 %v746, 0.0
          %v773 = vmax.f32 %v749, 0.0
          %v774 = vmax.f32 %v751, 0.0
          %v775 = vmax.f32 %v754, 0.0
          %v776 = vmax.f32 %v756, 0.0
          %v777 = vmax.f32 %v759, 0.0
          %v778 = vmax.f32 %v761, 0.0
          %s779 = scalar_lea.vmem [#allocation9], 128
          %v780 = vld [vmem:[%s779] sm:$0xf]
          %v781 = vld [vmem:[%s779 + $0x4] sm:$0xf]
          %v782 = vld [vmem:[%s779 + $0x8] sm:$0xf]
          %v783 = vld [vmem:[%s779 + $0xc] sm:$0xf]
          %v784 = vld [vmem:[%s779 + $0x10] sm:$0xf]
          %v785 = vld [vmem:[%s779 + $0x14] sm:$0xf]
          %v786 = vld [vmem:[%s779 + $0x18] sm:$0xf]
          %v787 = vld [vmem:[%s779 + $0x1c] sm:$0xf]
          %v788 = vld [vmem:[%s779 + $0x20] sm:$0xf]
          %v789 = vld [vmem:[%s779 + $0x24] sm:$0xf]
          %v790 = vld [vmem:[%s779 + $0x28] sm:$0xf]
          %v791 = vld [vmem:[%s779 + $0x2c] sm:$0xf]
          %v792 = vld [vmem:[%s779 + $0x30] sm:$0xf]
          %v793 = vld [vmem:[%s779 + $0x34] sm:$0xf]
          %v794 = vld [vmem:[%s779 + $0x38] sm:$0xf]
          %v795 = vld [vmem:[%s779 + $0x3c] sm:$0xf]
          %v796 = vld [vmem:[#allocation13 + $0x4] sm:$0x1]
          %v797 = vperm.slane %v796, 0
          %v814 = vunpack.c.l.b16 %v780
          %v815 = vunpack.c.l.b16 %v781
          %v816 = vunpack.c.l.b16 %v782
          %v817 = vunpack.c.l.b16 %v783
          %v818 = vunpack.c.l.b16 %v784
          %v819 = vunpack.c.l.b16 %v785
          %v820 = vunpack.c.l.b16 %v786
          %v821 = vunpack.c.l.b16 %v787
          %v822 = vunpack.c.l.b16 %v788
          %v823 = vunpack.c.l.b16 %v789
          %v824 = vunpack.c.l.b16 %v790
          %v825 = vunpack.c.l.b16 %v791
          %v826 = vunpack.c.l.b16 %v792
          %v827 = vunpack.c.l.b16 %v793
          %v828 = vunpack.c.l.b16 %v794
          %v829 = vunpack.c.l.b16 %v795
          %v830 = vpack.c.b16 %v815, %v814
          %v831 = vpack.c.b16 %v817, %v816
          %v832 = vpack.c.b16 %v819, %v818
          %v833 = vpack.c.b16 %v821, %v820
          %v834 = vpack.c.b16 %v823, %v822
          %v835 = vpack.c.b16 %v825, %v824
          %v836 = vpack.c.b16 %v827, %v826
          %v837 = vpack.c.b16 %v829, %v828
          %846 = vmatpush.bf16.msra.mxu0 %v837
          %847 = vmatpush.bf16.msra.mxu0 %v836
          %848 = vmatpush.bf16.msra.mxu0 %v835
          %849 = vmatpush.bf16.msra.mxu0 %v834
          %850 = vmatpush.bf16.msra.mxu0 %v833
          %851 = vmatpush.bf16.msra.mxu0 %v832
          %852 = vmatpush.bf16.msra.mxu0 %v831
          %853 = vmatpush.bf16.msra.mxu0 %v830
          %854 = vmatmul.bf16.gmra.mxu0 %v510
          %v855 = vpop.f32.mrf.mxu0
          %v856 = vadd.f32 %v797, %v855
          %v857 = vpop.f32.mrf.mxu0
          %v858 = vadd.f32 %v797, %v857
          %859 = vmatmul.bf16.gmra.mxu0 %v511
          %v860 = vpop.f32.mrf.mxu0
          %v861 = vadd.f32 %v797, %v860
          %v862 = vpop.f32.mrf.mxu0
          %v863 = vadd.f32 %v797, %v862
          %864 = vmatmul.bf16.gmra.mxu0 %v512
          %v865 = vpop.f32.mrf.mxu0
          %v866 = vadd.f32 %v797, %v865
          %v867 = vpop.f32.mrf.mxu0
          %v868 = vadd.f32 %v797, %v867
          %869 = vmatmul.bf16.gmra.mxu0 %v513
          %v870 = vpop.f32.mrf.mxu0
          %v871 = vadd.f32 %v797, %v870
          %v872 = vpop.f32.mrf.mxu0
          %v873 = vadd.f32 %v797, %v872
          %874 = vmatmul.bf16.gmra.mxu0 %v514
          %v875 = vpop.f32.mrf.mxu0
          %v876 = vadd.f32 %v797, %v875
          %v877 = vpop.f32.mrf.mxu0
          %v878 = vadd.f32 %v797, %v877
          %879 = vmatmul.bf16.gmra.mxu0 %v515
          %v880 = vpop.f32.mrf.mxu0
          %v881 = vadd.f32 %v797, %v880
          %v882 = vpop.f32.mrf.mxu0
          %v883 = vadd.f32 %v797, %v882
          %884 = vmatmul.bf16.gmra.mxu0 %v516
          %v885 = vpop.f32.mrf.mxu0
          %v886 = vadd.f32 %v797, %v885
          %v887 = vpop.f32.mrf.mxu0
          %v888 = vadd.f32 %v797, %v887
          %889 = vmatmul.bf16.gmra.mxu0 %v517
          %v890 = vpop.f32.mrf.mxu0
          %v891 = vadd.f32 %v797, %v890
          %v892 = vpop.f32.mrf.mxu0
          %v893 = vadd.f32 %v797, %v892
          %894 = vdwg.mxu0
          %v895 = vmax.f32 %v856, 0.0
          %v896 = vmax.f32 %v858, 0.0
          %v897 = vmax.f32 %v861, 0.0
          %v898 = vmax.f32 %v863, 0.0
          %v899 = vmax.f32 %v866, 0.0
          %v900 = vmax.f32 %v868, 0.0
          %v901 = vmax.f32 %v871, 0.0
          %v902 = vmax.f32 %v873, 0.0
          %v903 = vmax.f32 %v876, 0.0
          %v904 = vmax.f32 %v878, 0.0
          %v905 = vmax.f32 %v881, 0.0
          %v906 = vmax.f32 %v883, 0.0
          %v907 = vmax.f32 %v886, 0.0
          %v908 = vmax.f32 %v888, 0.0
          %v909 = vmax.f32 %v891, 0.0
          %v910 = vmax.f32 %v893, 0.0
          %v911 = vpack.c.bf16 %v763, %v763
          %v912 = vpack.c.bf16 %v764, %v764
          %v913 = vpack.c.bf16 %v765, %v765
          %v914 = vpack.c.bf16 %v766, %v766
          %v915 = vpack.c.bf16 %v767, %v767
          %v916 = vpack.c.bf16 %v768, %v768
          %v917 = vpack.c.bf16 %v769, %v769
          %v918 = vpack.c.bf16 %v770, %v770
          %v919 = vpack.c.bf16 %v771, %v771
          %v920 = vpack.c.bf16 %v772, %v772
          %v921 = vpack.c.bf16 %v773, %v773
          %v922 = vpack.c.bf16 %v774, %v774
          %v923 = vpack.c.bf16 %v775, %v775
          %v924 = vpack.c.bf16 %v776, %v776
          %v925 = vpack.c.bf16 %v777, %v777
          %v926 = vpack.c.bf16 %v778, %v778
          %927 = vst [vmem:[#allocation2] sm:$0xf] %v911
          %928 = vst [vmem:[#allocation2 + $0x4] sm:$0xf] %v912
          %929 = vst [vmem:[#allocation2 + $0x8] sm:$0xf] %v913
          %930 = vst [vmem:[#allocation2 + $0xc] sm:$0xf] %v914
          %931 = vst [vmem:[#allocation2 + $0x10] sm:$0xf] %v915
          %932 = vst [vmem:[#allocation2 + $0x14] sm:$0xf] %v916
          %933 = vst [vmem:[#allocation2 + $0x18] sm:$0xf] %v917
          %934 = vst [vmem:[#allocation2 + $0x1c] sm:$0xf] %v918
          %935 = vst [vmem:[#allocation2 + $0x20] sm:$0xf] %v919
          %936 = vst [vmem:[#allocation2 + $0x24] sm:$0xf] %v920
          %937 = vst [vmem:[#allocation2 + $0x28] sm:$0xf] %v921
          %938 = vst [vmem:[#allocation2 + $0x2c] sm:$0xf] %v922
          %939 = vst [vmem:[#allocation2 + $0x30] sm:$0xf] %v923
          %940 = vst [vmem:[#allocation2 + $0x34] sm:$0xf] %v924
          %941 = vst [vmem:[#allocation2 + $0x38] sm:$0xf] %v925
          %942 = vst [vmem:[#allocation2 + $0x3c] sm:$0xf] %v926
          %v943 = vpack.c.bf16 %v895, %v895
          %v944 = vpack.c.bf16 %v896, %v896
          %v945 = vpack.c.bf16 %v897, %v897
          %v946 = vpack.c.bf16 %v898, %v898
          %v947 = vpack.c.bf16 %v899, %v899
          %v948 = vpack.c.bf16 %v900, %v900
          %v949 = vpack.c.bf16 %v901, %v901
          %v950 = vpack.c.bf16 %v902, %v902
          %v951 = vpack.c.bf16 %v903, %v903
          %v952 = vpack.c.bf16 %v904, %v904
          %v953 = vpack.c.bf16 %v905, %v905
          %v954 = vpack.c.bf16 %v906, %v906
          %v955 = vpack.c.bf16 %v907, %v907
          %v956 = vpack.c.bf16 %v908, %v908
          %v957 = vpack.c.bf16 %v909, %v909
          %v958 = vpack.c.bf16 %v910, %v910
          %959 = vst [vmem:[#allocation3] sm:$0xf] %v943
          %960 = vst [vmem:[#allocation3 + $0x4] sm:$0xf] %v944
          %961 = vst [vmem:[#allocation3 + $0x8] sm:$0xf] %v945
          %962 = vst [vmem:[#allocation3 + $0xc] sm:$0xf] %v946
          %963 = vst [vmem:[#allocation3 + $0x10] sm:$0xf] %v947
          %964 = vst [vmem:[#allocation3 + $0x14] sm:$0xf] %v948
          %965 = vst [vmem:[#allocation3 + $0x18] sm:$0xf] %v949
          %966 = vst [vmem:[#allocation3 + $0x1c] sm:$0xf] %v950
          %967 = vst [vmem:[#allocation3 + $0x20] sm:$0xf] %v951
          %968 = vst [vmem:[#allocation3 + $0x24] sm:$0xf] %v952
          %969 = vst [vmem:[#allocation3 + $0x28] sm:$0xf] %v953
          %970 = vst [vmem:[#allocation3 + $0x2c] sm:$0xf] %v954
          %971 = vst [vmem:[#allocation3 + $0x30] sm:$0xf] %v955
          %972 = vst [vmem:[#allocation3 + $0x34] sm:$0xf] %v956
          %973 = vst [vmem:[#allocation3 + $0x38] sm:$0xf] %v957
          %974 = vst [vmem:[#allocation3 + $0x3c] sm:$0xf] %v958
        $region72: #{tpu_custom_call.1} parent=43 // pred_fallthru
          _
        %v975 = vld [vmem:[%s364] sm:$0xf]
        %v976 = vld [vmem:[%s364 + $0x4] sm:$0xf]
        %v977 = vld [vmem:[%s364 + $0x8] sm:$0xf]
        %v978 = vld [vmem:[%s364 + $0xc] sm:$0xf]
        %v979 = vld [vmem:[%s364 + $0x10] sm:$0xf]
        %v980 = vld [vmem:[%s364 + $0x14] sm:$0xf]
        %v981 = vld [vmem:[%s364 + $0x18] sm:$0xf]
        %v982 = vld [vmem:[%s364 + $0x1c] sm:$0xf]
        %v983 = vld [vmem:[%s364 + $0x20] sm:$0xf]
        %v984 = vld [vmem:[%s364 + $0x24] sm:$0xf]
        %v985 = vld [vmem:[%s364 + $0x28] sm:$0xf]
        %v986 = vld [vmem:[%s364 + $0x2c] sm:$0xf]
        %v987 = vld [vmem:[%s364 + $0x30] sm:$0xf]
        %v988 = vld [vmem:[%s364 + $0x34] sm:$0xf]
        %v989 = vld [vmem:[%s364 + $0x38] sm:$0xf]
        %v990 = vld [vmem:[%s364 + $0x3c] sm:$0xf]
        %v991 = vld [vmem:[#allocation9] sm:$0xf]
        %v992 = vld [vmem:[#allocation9 + $0x4] sm:$0xf]
        %v993 = vld [vmem:[#allocation9 + $0x8] sm:$0xf]
        %v994 = vld [vmem:[#allocation9 + $0xc] sm:$0xf]
        %v995 = vld [vmem:[#allocation9 + $0x10] sm:$0xf]
        %v996 = vld [vmem:[#allocation9 + $0x14] sm:$0xf]
        %v997 = vld [vmem:[#allocation9 + $0x18] sm:$0xf]
        %v998 = vld [vmem:[#allocation9 + $0x1c] sm:$0xf]
        %v999 = vld [vmem:[#allocation9 + $0x20] sm:$0xf]
        %v1000 = vld [vmem:[#allocation9 + $0x24] sm:$0xf]
        %v1001 = vld [vmem:[#allocation9 + $0x28] sm:$0xf]
        %v1002 = vld [vmem:[#allocation9 + $0x2c] sm:$0xf]
        %v1003 = vld [vmem:[#allocation9 + $0x30] sm:$0xf]
        %v1004 = vld [vmem:[#allocation9 + $0x34] sm:$0xf]
        %v1005 = vld [vmem:[#allocation9 + $0x38] sm:$0xf]
        %v1006 = vld [vmem:[#allocation9 + $0x3c] sm:$0xf]
        %v1007 = vld [vmem:[#allocation13] sm:$0x1]
        %v1008 = vperm.slane %v1007, 0
        %v1025 = vunpack.c.l.b16 %v975
        %v1026 = vunpack.c.l.b16 %v976
        %v1027 = vunpack.c.l.b16 %v977
        %v1028 = vunpack.c.l.b16 %v978
        %v1029 = vunpack.c.l.b16 %v979
        %v1030 = vunpack.c.l.b16 %v980
        %v1031 = vunpack.c.l.b16 %v981
        %v1032 = vunpack.c.l.b16 %v982
        %v1033 = vunpack.c.l.b16 %v983
        %v1034 = vunpack.c.l.b16 %v984
        %v1035 = vunpack.c.l.b16 %v985
        %v1036 = vunpack.c.l.b16 %v986
        %v1037 = vunpack.c.l.b16 %v987
        %v1038 = vunpack.c.l.b16 %v988
        %v1039 = vunpack.c.l.b16 %v989
        %v1040 = vunpack.c.l.b16 %v990
        %v1041 = vpack.c.b16 %v1026, %v1025
        %v1042 = vpack.c.b16 %v1028, %v1027
        %v1043 = vpack.c.b16 %v1030, %v1029
        %v1044 = vpack.c.b16 %v1032, %v1031
        %v1045 = vpack.c.b16 %v1034, %v1033
        %v1046 = vpack.c.b16 %v1036, %v1035
        %v1047 = vpack.c.b16 %v1038, %v1037
        %v1048 = vpack.c.b16 %v1040, %v1039
        %v1073 = vunpack.c.l.b16 %v991
        %v1074 = vunpack.c.l.b16 %v992
        %v1075 = vunpack.c.l.b16 %v993
        %v1076 = vunpack.c.l.b16 %v994
        %v1077 = vunpack.c.l.b16 %v995
        %v1078 = vunpack.c.l.b16 %v996
        %v1079 = vunpack.c.l.b16 %v997
        %v1080 = vunpack.c.l.b16 %v998
        %v1081 = vunpack.c.l.b16 %v999
        %v1082 = vunpack.c.l.b16 %v1000
        %v1083 = vunpack.c.l.b16 %v1001
        %v1084 = vunpack.c.l.b16 %v1002
        %v1085 = vunpack.c.l.b16 %v1003
        %v1086 = vunpack.c.l.b16 %v1004
        %v1087 = vunpack.c.l.b16 %v1005
        %v1088 = vunpack.c.l.b16 %v1006
        %v1089 = vpack.c.b16 %v1074, %v1073
        %v1090 = vpack.c.b16 %v1076, %v1075
        %v1091 = vpack.c.b16 %v1078, %v1077
        %v1092 = vpack.c.b16 %v1080, %v1079
        %v1093 = vpack.c.b16 %v1082, %v1081
        %v1094 = vpack.c.b16 %v1084, %v1083
        %v1095 = vpack.c.b16 %v1086, %v1085
        %v1096 = vpack.c.b16 %v1088, %v1087
        %1105 = vmatpush.bf16.msra.mxu0 %v1096
        %1106 = vmatpush.bf16.msra.mxu0 %v1095
        %1107 = vmatpush.bf16.msra.mxu0 %v1094
        %1108 = vmatpush.bf16.msra.mxu0 %v1093
        %1109 = vmatpush.bf16.msra.mxu0 %v1092
        %1110 = vmatpush.bf16.msra.mxu0 %v1091
        %1111 = vmatpush.bf16.msra.mxu0 %v1090
        %1112 = vmatpush.bf16.msra.mxu0 %v1089
        %1113 = vmatmul.bf16.gmra.mxu0 %v1041
        %v1114 = vpop.f32.mrf.mxu0
        %v1115 = vadd.f32 %v1008, %v1114
        %v1116 = vpop.f32.mrf.mxu0
        %v1117 = vadd.f32 %v1008, %v1116
        %1118 = vmatmul.bf16.gmra.mxu0 %v1042
        %v1119 = vpop.f32.mrf.mxu0
        %v1120 = vadd.f32 %v1008, %v1119
        %v1121 = vpop.f32.mrf.mxu0
        %v1122 = vadd.f32 %v1008, %v1121
        %1123 = vmatmul.bf16.gmra.mxu0 %v1043
        %v1124 = vpop.f32.mrf.mxu0
        %v1125 = vadd.f32 %v1008, %v1124
        %v1126 = vpop.f32.mrf.mxu0
        %v1127 = vadd.f32 %v1008, %v1126
        %1128 = vmatmul.bf16.gmra.mxu0 %v1044
        %v1129 = vpop.f32.mrf.mxu0
        %v1130 = vadd.f32 %v1008, %v1129
        %v1131 = vpop.f32.mrf.mxu0
        %v1132 = vadd.f32 %v1008, %v1131
        %1133 = vmatmul.bf16.gmra.mxu0 %v1045
        %v1134 = vpop.f32.mrf.mxu0
        %v1135 = vadd.f32 %v1008, %v1134
        %v1136 = vpop.f32.mrf.mxu0
        %v1137 = vadd.f32 %v1008, %v1136
        %1138 = vmatmul.bf16.gmra.mxu0 %v1046
        %v1139 = vpop.f32.mrf.mxu0
        %v1140 = vadd.f32 %v1008, %v1139
        %v1141 = vpop.f32.mrf.mxu0
        %v1142 = vadd.f32 %v1008, %v1141
        %1143 = vmatmul.bf16.gmra.mxu0 %v1047
        %v1144 = vpop.f32.mrf.mxu0
        %v1145 = vadd.f32 %v1008, %v1144
        %v1146 = vpop.f32.mrf.mxu0
        %v1147 = vadd.f32 %v1008, %v1146
        %1148 = vmatmul.bf16.gmra.mxu0 %v1048
        %v1149 = vpop.f32.mrf.mxu0
        %v1150 = vadd.f32 %v1008, %v1149
        %v1151 = vpop.f32.mrf.mxu0
        %v1152 = vadd.f32 %v1008, %v1151
        %1153 = vdwg.mxu0
        %v1154 = vmax.f32 %v1115, 0.0
        %v1155 = vmax.f32 %v1117, 0.0
        %v1156 = vmax.f32 %v1120, 0.0
        %v1157 = vmax.f32 %v1122, 0.0
        %v1158 = vmax.f32 %v1125, 0.0
        %v1159 = vmax.f32 %v1127, 0.0
        %v1160 = vmax.f32 %v1130, 0.0
        %v1161 = vmax.f32 %v1132, 0.0
        %v1162 = vmax.f32 %v1135, 0.0
        %v1163 = vmax.f32 %v1137, 0.0
        %v1164 = vmax.f32 %v1140, 0.0
        %v1165 = vmax.f32 %v1142, 0.0
        %v1166 = vmax.f32 %v1145, 0.0
        %v1167 = vmax.f32 %v1147, 0.0
        %v1168 = vmax.f32 %v1150, 0.0
        %v1169 = vmax.f32 %v1152, 0.0
        %v1170 = vld [vmem:[#allocation10] sm:$0xf]
        %v1171 = vld [vmem:[#allocation10 + $0x4] sm:$0xf]
        %v1172 = vld [vmem:[#allocation10 + $0x8] sm:$0xf]
        %v1173 = vld [vmem:[#allocation10 + $0xc] sm:$0xf]
        %v1174 = vld [vmem:[#allocation10 + $0x10] sm:$0xf]
        %v1175 = vld [vmem:[#allocation10 + $0x14] sm:$0xf]
        %v1176 = vld [vmem:[#allocation10 + $0x18] sm:$0xf]
        %v1177 = vld [vmem:[#allocation10 + $0x1c] sm:$0xf]
        %v1178 = vld [vmem:[#allocation10 + $0x20] sm:$0xf]
        %v1179 = vld [vmem:[#allocation10 + $0x24] sm:$0xf]
        %v1180 = vld [vmem:[#allocation10 + $0x28] sm:$0xf]
        %v1181 = vld [vmem:[#allocation10 + $0x2c] sm:$0xf]
        %v1182 = vld [vmem:[#allocation10 + $0x30] sm:$0xf]
        %v1183 = vld [vmem:[#allocation10 + $0x34] sm:$0xf]
        %v1184 = vld [vmem:[#allocation10 + $0x38] sm:$0xf]
        %v1185 = vld [vmem:[#allocation10 + $0x3c] sm:$0xf]
        %v1186 = vld [vmem:[#allocation13 + $0x1] sm:$0x1]
        %v1187 = vpack.c.bf16 %v1155, %v1154
        %v1188 = vpack.c.bf16 %v1157, %v1156
        %v1189 = vpack.c.bf16 %v1159, %v1158
        %v1190 = vpack.c.bf16 %v1161, %v1160
        %v1191 = vpack.c.bf16 %v1163, %v1162
        %v1192 = vpack.c.bf16 %v1165, %v1164
        %v1193 = vpack.c.bf16 %v1167, %v1166
        %v1194 = vpack.c.bf16 %v1169, %v1168
        %v1195 = vperm.slane %v1186, 0
        %v1212 = vunpack.c.l.b16 %v1170
        %v1213 = vunpack.c.l.b16 %v1171
        %v1214 = vunpack.c.l.b16 %v1172
        %v1215 = vunpack.c.l.b16 %v1173
        %v1216 = vunpack.c.l.b16 %v1174
        %v1217 = vunpack.c.l.b16 %v1175
        %v1218 = vunpack.c.l.b16 %v1176
        %v1219 = vunpack.c.l.b16 %v1177
        %v1220 = vunpack.c.l.b16 %v1178
        %v1221 = vunpack.c.l.b16 %v1179
        %v1222 = vunpack.c.l.b16 %v1180
        %v1223 = vunpack.c.l.b16 %v1181
        %v1224 = vunpack.c.l.b16 %v1182
        %v1225 = vunpack.c.l.b16 %v1183
        %v1226 = vunpack.c.l.b16 %v1184
        %v1227 = vunpack.c.l.b16 %v1185
        %v1228 = vpack.c.b16 %v1213, %v1212
        %v1229 = vpack.c.b16 %v1215, %v1214
        %v1230 = vpack.c.b16 %v1217, %v1216
        %v1231 = vpack.c.b16 %v1219, %v1218
        %v1232 = vpack.c.b16 %v1221, %v1220
        %v1233 = vpack.c.b16 %v1223, %v1222
        %v1234 = vpack.c.b16 %v1225, %v1224
        %v1235 = vpack.c.b16 %v1227, %v1226
        %1244 = vmatpush.bf16.msra.mxu0 %v1235
        %1245 = vmatpush.bf16.msra.mxu0 %v1234
        %1246 = vmatpush.bf16.msra.mxu0 %v1233
        %1247 = vmatpush.bf16.msra.mxu0 %v1232
        %1248 = vmatpush.bf16.msra.mxu0 %v1231
        %1249 = vmatpush.bf16.msra.mxu0 %v1230
        %1250 = vmatpush.bf16.msra.mxu0 %v1229
        %1251 = vmatpush.bf16.msra.mxu0 %v1228
        %1252 = vmatmul.bf16.gmra.mxu0 %v1187
        %v1253 = vpop.f32.mrf.mxu0
        %v1254 = vadd.f32 %v1195, %v1253
        %v1255 = vpop.f32.mrf.mxu0
        %v1256 = vadd.f32 %v1195, %v1255
        %1257 = vmatmul.bf16.gmra.mxu0 %v1188
        %v1258 = vpop.f32.mrf.mxu0
        %v1259 = vadd.f32 %v1195, %v1258
        %v1260 = vpop.f32.mrf.mxu0
        %v1261 = vadd.f32 %v1195, %v1260
        %1262 = vmatmul.bf16.gmra.mxu0 %v1189
        %v1263 = vpop.f32.mrf.mxu0
        %v1264 = vadd.f32 %v1195, %v1263
        %v1265 = vpop.f32.mrf.mxu0
        %v1266 = vadd.f32 %v1195, %v1265
        %1267 = vmatmul.bf16.gmra.mxu0 %v1190
        %v1268 = vpop.f32.mrf.mxu0
        %v1269 = vadd.f32 %v1195, %v1268
        %v1270 = vpop.f32.mrf.mxu0
        %v1271 = vadd.f32 %v1195, %v1270
        %1272 = vmatmul.bf16.gmra.mxu0 %v1191
        %v1273 = vpop.f32.mrf.mxu0
        %v1274 = vadd.f32 %v1195, %v1273
        %v1275 = vpop.f32.mrf.mxu0
        %v1276 = vadd.f32 %v1195, %v1275
        %1277 = vmatmul.bf16.gmra.mxu0 %v1192
        %v1278 = vpop.f32.mrf.mxu0
        %v1279 = vadd.f32 %v1195, %v1278
        %v1280 = vpop.f32.mrf.mxu0
        %v1281 = vadd.f32 %v1195, %v1280
        %1282 = vmatmul.bf16.gmra.mxu0 %v1193
        %v1283 = vpop.f32.mrf.mxu0
        %v1284 = vadd.f32 %v1195, %v1283
        %v1285 = vpop.f32.mrf.mxu0
        %v1286 = vadd.f32 %v1195, %v1285
        %1287 = vmatmul.bf16.gmra.mxu0 %v1194
        %v1288 = vpop.f32.mrf.mxu0
        %v1289 = vadd.f32 %v1195, %v1288
        %v1290 = vpop.f32.mrf.mxu0
        %v1291 = vadd.f32 %v1195, %v1290
        %1292 = vdwg.mxu0
        %v1293 = vmax.f32 %v1254, 0.0
        %v1294 = vmax.f32 %v1256, 0.0
        %v1295 = vmax.f32 %v1259, 0.0
        %v1296 = vmax.f32 %v1261, 0.0
        %v1297 = vmax.f32 %v1264, 0.0
        %v1298 = vmax.f32 %v1266, 0.0
        %v1299 = vmax.f32 %v1269, 0.0
        %v1300 = vmax.f32 %v1271, 0.0
        %v1301 = vmax.f32 %v1274, 0.0
        %v1302 = vmax.f32 %v1276, 0.0
        %v1303 = vmax.f32 %v1279, 0.0
        %v1304 = vmax.f32 %v1281, 0.0
        %v1305 = vmax.f32 %v1284, 0.0
        %v1306 = vmax.f32 %v1286, 0.0
        %v1307 = vmax.f32 %v1289, 0.0
        %v1308 = vmax.f32 %v1291, 0.0
        %v1309 = vpack.c.bf16 %v1294, %v1293
        %v1310 = vpack.c.bf16 %v1296, %v1295
        %v1311 = vpack.c.bf16 %v1298, %v1297
        %v1312 = vpack.c.bf16 %v1300, %v1299
        %v1313 = vpack.c.bf16 %v1302, %v1301
        %v1314 = vpack.c.bf16 %v1304, %v1303
        %v1315 = vpack.c.bf16 %v1306, %v1305
        %v1316 = vpack.c.bf16 %v1308, %v1307
        %v1317 = vld [vmem:[#allocation2] sm:$0xf]
        %v1318 = vld [vmem:[#allocation2 + $0x4] sm:$0xf]
        %v1319 = vld [vmem:[#allocation2 + $0x8] sm:$0xf]
        %v1320 = vld [vmem:[#allocation2 + $0xc] sm:$0xf]
        %v1321 = vld [vmem:[#allocation2 + $0x10] sm:$0xf]
        %v1322 = vld [vmem:[#allocation2 + $0x14] sm:$0xf]
        %v1323 = vld [vmem:[#allocation2 + $0x18] sm:$0xf]
        %v1324 = vld [vmem:[#allocation2 + $0x1c] sm:$0xf]
        %v1325 = vld [vmem:[#allocation2 + $0x20] sm:$0xf]
        %v1326 = vld [vmem:[#allocation2 + $0x24] sm:$0xf]
        %v1327 = vld [vmem:[#allocation2 + $0x28] sm:$0xf]
        %v1328 = vld [vmem:[#allocation2 + $0x2c] sm:$0xf]
        %v1329 = vld [vmem:[#allocation2 + $0x30] sm:$0xf]
        %v1330 = vld [vmem:[#allocation2 + $0x34] sm:$0xf]
        %v1331 = vld [vmem:[#allocation2 + $0x38] sm:$0xf]
        %v1332 = vld [vmem:[#allocation2 + $0x3c] sm:$0xf]
        %v1349 = vunpack.c.l.b16 %v1317
        %v1350 = vunpack.c.l.b16 %v1318
        %v1351 = vunpack.c.l.b16 %v1319
        %v1352 = vunpack.c.l.b16 %v1320
        %v1353 = vunpack.c.l.b16 %v1321
        %v1354 = vunpack.c.l.b16 %v1322
        %v1355 = vunpack.c.l.b16 %v1323
        %v1356 = vunpack.c.l.b16 %v1324
        %v1357 = vunpack.c.l.b16 %v1325
        %v1358 = vunpack.c.l.b16 %v1326
        %v1359 = vunpack.c.l.b16 %v1327
        %v1360 = vunpack.c.l.b16 %v1328
        %v1361 = vunpack.c.l.b16 %v1329
        %v1362 = vunpack.c.l.b16 %v1330
        %v1363 = vunpack.c.l.b16 %v1331
        %v1364 = vunpack.c.l.b16 %v1332
        %v1365 = vpack.c.b16 %v1350, %v1349
        %v1366 = vpack.c.b16 %v1352, %v1351
        %v1367 = vpack.c.b16 %v1354, %v1353
        %v1368 = vpack.c.b16 %v1356, %v1355
        %v1369 = vpack.c.b16 %v1358, %v1357
        %v1370 = vpack.c.b16 %v1360, %v1359
        %v1371 = vpack.c.b16 %v1362, %v1361
        %v1372 = vpack.c.b16 %v1364, %v1363
        %1381 = vmatpush.bf16.xpose.msra.mxu0 %v1372
        %1382 = vmatpush.bf16.xpose.msra.mxu0 %v1371
        %1383 = vmatpush.bf16.xpose.msra.mxu0 %v1370
        %1384 = vmatpush.bf16.xpose.msra.mxu0 %v1369
        %1385 = vmatpush.bf16.xpose.msra.mxu0 %v1368
        %1386 = vmatpush.bf16.xpose.msra.mxu0 %v1367
        %1387 = vmatpush.bf16.xpose.msra.mxu0 %v1366
        %1388 = vmatpush.bf16.xpose.msra.mxu0 %v1365
        %1389 = vmatmul.bf16.gmra.mxu0 %v1309
        %v1390 = vpop.f32.mrf.mxu0
        %v1391 = vadd.f32 0.0, %v1390
        %v1392 = vpop.f32.mrf.mxu0
        %v1393 = vadd.f32 0.0, %v1392
        %1394 = vmatmul.bf16.gmra.mxu0 %v1310
        %v1395 = vpop.f32.mrf.mxu0
        %v1396 = vadd.f32 0.0, %v1395
        %v1397 = vpop.f32.mrf.mxu0
        %v1398 = vadd.f32 0.0, %v1397
        %1399 = vmatmul.bf16.gmra.mxu0 %v1311
        %v1400 = vpop.f32.mrf.mxu0
        %v1401 = vadd.f32 0.0, %v1400
        %v1402 = vpop.f32.mrf.mxu0
        %v1403 = vadd.f32 0.0, %v1402
        %1404 = vmatmul.bf16.gmra.mxu0 %v1312
        %v1405 = vpop.f32.mrf.mxu0
        %v1406 = vadd.f32 0.0, %v1405
        %v1407 = vpop.f32.mrf.mxu0
        %v1408 = vadd.f32 0.0, %v1407
        %1409 = vmatmul.bf16.gmra.mxu0 %v1313
        %v1410 = vpop.f32.mrf.mxu0
        %v1411 = vadd.f32 0.0, %v1410
        %v1412 = vpop.f32.mrf.mxu0
        %v1413 = vadd.f32 0.0, %v1412
        %1414 = vmatmul.bf16.gmra.mxu0 %v1314
        %v1415 = vpop.f32.mrf.mxu0
        %v1416 = vadd.f32 0.0, %v1415
        %v1417 = vpop.f32.mrf.mxu0
        %v1418 = vadd.f32 0.0, %v1417
        %1419 = vmatmul.bf16.gmra.mxu0 %v1315
        %v1420 = vpop.f32.mrf.mxu0
        %v1421 = vadd.f32 0.0, %v1420
        %v1422 = vpop.f32.mrf.mxu0
        %v1423 = vadd.f32 0.0, %v1422
        %1424 = vmatmul.bf16.gmra.mxu0 %v1316
        %v1425 = vpop.f32.mrf.mxu0
        %v1426 = vadd.f32 0.0, %v1425
        %v1427 = vpop.f32.mrf.mxu0
        %v1428 = vadd.f32 0.0, %v1427
        %1429 = vdwg.mxu0
        %v1430 = vlaneseq
        %v1431 = vand.u32 %v1430, 127
        %vm1432 = vcmp.lt.s32.totalorder %v1431, 8
        %v1433 = vsel %vm1432, %v1391, -1e+30
        %v1434 = vsel %vm1432, %v1393, -1e+30
        %v1435 = vsel %vm1432, %v1396, -1e+30
        %v1436 = vsel %vm1432, %v1398, -1e+30
        %v1437 = vsel %vm1432, %v1401, -1e+30
        %v1438 = vsel %vm1432, %v1403, -1e+30
        %v1439 = vsel %vm1432, %v1406, -1e+30
        %v1440 = vsel %vm1432, %v1408, -1e+30
        %v1441 = vsel %vm1432, %v1411, -1e+30
        %v1442 = vsel %vm1432, %v1413, -1e+30
        %v1443 = vsel %vm1432, %v1416, -1e+30
        %v1444 = vsel %vm1432, %v1418, -1e+30
        %v1445 = vsel %vm1432, %v1421, -1e+30
        %v1446 = vsel %vm1432, %v1423, -1e+30
        %v1447 = vsel %vm1432, %v1426, -1e+30
        %v1448 = vsel %vm1432, %v1428, -1e+30
        %1449 = vmax.xlane.f32.xlu0 %v1433
        %v1450 = vpop.xlane.xlu0 %1449
        %1451 = vmax.xlane.f32.xlu0 %v1434
        %v1452 = vpop.xlane.xlu0 %1451
        %1453 = vmax.xlane.f32.xlu0 %v1435
        %v1454 = vpop.xlane.xlu0 %1453
        %1455 = vmax.xlane.f32.xlu0 %v1436
        %v1456 = vpop.xlane.xlu0 %1455
        %1457 = vmax.xlane.f32.xlu0 %v1437
        %v1458 = vpop.xlane.xlu0 %1457
        %1459 = vmax.xlane.f32.xlu0 %v1438
        %v1460 = vpop.xlane.xlu0 %1459
        %1461 = vmax.xlane.f32.xlu0 %v1439
        %v1462 = vpop.xlane.xlu0 %1461
        %1463 = vmax.xlane.f32.xlu0 %v1440
        %v1464 = vpop.xlane.xlu0 %1463
        %1465 = vmax.xlane.f32.xlu0 %v1441
        %v1466 = vpop.xlane.xlu0 %1465
        %1467 = vmax.xlane.f32.xlu0 %v1442
        %v1468 = vpop.xlane.xlu0 %1467
        %1469 = vmax.xlane.f32.xlu0 %v1443
        %v1470 = vpop.xlane.xlu0 %1469
        %1471 = vmax.xlane.f32.xlu0 %v1444
        %v1472 = vpop.xlane.xlu0 %1471
        %1473 = vmax.xlane.f32.xlu0 %v1445
        %v1474 = vpop.xlane.xlu0 %1473
        %1475 = vmax.xlane.f32.xlu0 %v1446
        %v1476 = vpop.xlane.xlu0 %1475
        %1477 = vmax.xlane.f32.xlu0 %v1447
        %v1478 = vpop.xlane.xlu0 %1477
        %1479 = vmax.xlane.f32.xlu0 %v1448
        %v1480 = vpop.xlane.xlu0 %1479
        %v1481 = vsub.f32 %v1433, %v1450
        %v1482 = vsub.f32 %v1434, %v1452
        %v1483 = vsub.f32 %v1435, %v1454
        %v1484 = vsub.f32 %v1436, %v1456
        %v1485 = vsub.f32 %v1437, %v1458
        %v1486 = vsub.f32 %v1438, %v1460
        %v1487 = vsub.f32 %v1439, %v1462
        %v1488 = vsub.f32 %v1440, %v1464
        %v1489 = vsub.f32 %v1441, %v1466
        %v1490 = vsub.f32 %v1442, %v1468
        %v1491 = vsub.f32 %v1443, %v1470
        %v1492 = vsub.f32 %v1444, %v1472
        %v1493 = vsub.f32 %v1445, %v1474
        %v1494 = vsub.f32 %v1446, %v1476
        %v1495 = vsub.f32 %v1447, %v1478
        %v1496 = vsub.f32 %v1448, %v1480
        %v1497 = vmul.f32 %v1481, 1.442695
        %v1498 = vpow.pop %v1497
        %v1499 = vmul.f32 %v1482, 1.442695
        %v1500 = vpow.pop %v1499
        %v1501 = vmul.f32 %v1483, 1.442695
        %v1502 = vpow.pop %v1501
        %v1503 = vmul.f32 %v1484, 1.442695
        %v1504 = vpow.pop %v1503
        %v1505 = vmul.f32 %v1485, 1.442695
        %v1506 = vpow.pop %v1505
        %v1507 = vmul.f32 %v1486, 1.442695
        %v1508 = vpow.pop %v1507
        %v1509 = vmul.f32 %v1487, 1.442695
        %v1510 = vpow.pop %v1509
        %v1511 = vmul.f32 %v1488, 1.442695
        %v1512 = vpow.pop %v1511
        %v1513 = vmul.f32 %v1489, 1.442695
        %v1514 = vpow.pop %v1513
        %v1515 = vmul.f32 %v1490, 1.442695
        %v1516 = vpow.pop %v1515
        %v1517 = vmul.f32 %v1491, 1.442695
        %v1518 = vpow.pop %v1517
        %v1519 = vmul.f32 %v1492, 1.442695
        %v1520 = vpow.pop %v1519
        %v1521 = vmul.f32 %v1493, 1.442695
        %v1522 = vpow.pop %v1521
        %v1523 = vmul.f32 %v1494, 1.442695
        %v1524 = vpow.pop %v1523
        %v1525 = vmul.f32 %v1495, 1.442695
        %v1526 = vpow.pop %v1525
        %v1527 = vmul.f32 %v1496, 1.442695
        %v1528 = vpow.pop %v1527
        %1529 = vadd.xlane.f32.xlu0 %v1498
        %v1530 = vpop.xlane.xlu0 %1529
        %1531 = vadd.xlane.f32.xlu0 %v1500
        %v1532 = vpop.xlane.xlu0 %1531
        %1533 = vadd.xlane.f32.xlu0 %v1502
        %v1534 = vpop.xlane.xlu0 %1533
        %1535 = vadd.xlane.f32.xlu0 %v1504
        %v1536 = vpop.xlane.xlu0 %1535
        %1537 = vadd.xlane.f32.xlu0 %v1506
        %v1538 = vpop.xlane.xlu0 %1537
        %1539 = vadd.xlane.f32.xlu0 %v1508
        %v1540 = vpop.xlane.xlu0 %1539
        %1541 = vadd.xlane.f32.xlu0 %v1510
        %v1542 = vpop.xlane.xlu0 %1541
        %1543 = vadd.xlane.f32.xlu0 %v1512
        %v1544 = vpop.xlane.xlu0 %1543
        %1545 = vadd.xlane.f32.xlu0 %v1514
        %v1546 = vpop.xlane.xlu0 %1545
        %1547 = vadd.xlane.f32.xlu0 %v1516
        %v1548 = vpop.xlane.xlu0 %1547
        %1549 = vadd.xlane.f32.xlu0 %v1518
        %v1550 = vpop.xlane.xlu0 %1549
        %1551 = vadd.xlane.f32.xlu0 %v1520
        %v1552 = vpop.xlane.xlu0 %1551
        %1553 = vadd.xlane.f32.xlu0 %v1522
        %v1554 = vpop.xlane.xlu0 %1553
        %1555 = vadd.xlane.f32.xlu0 %v1524
        %v1556 = vpop.xlane.xlu0 %1555
        %1557 = vadd.xlane.f32.xlu0 %v1526
        %v1558 = vpop.xlane.xlu0 %1557
        %1559 = vadd.xlane.f32.xlu0 %v1528
        %v1560 = vpop.xlane.xlu0 %1559
        %v1561 = vrcp.pop %v1530
        %v1562 = vrcp.pop %v1532
        %v1563 = vrcp.pop %v1534
        %v1564 = vrcp.pop %v1536
        %v1565 = vrcp.pop %v1538
        %v1566 = vrcp.pop %v1540
        %v1567 = vrcp.pop %v1542
        %v1568 = vrcp.pop %v1544
        %v1569 = vrcp.pop %v1546
        %v1570 = vrcp.pop %v1548
        %v1571 = vrcp.pop %v1550
        %v1572 = vrcp.pop %v1552
        %v1573 = vrcp.pop %v1554
        %v1574 = vrcp.pop %v1556
        %v1575 = vrcp.pop %v1558
        %v1576 = vrcp.pop %v1560
        %v1577 = vmul.f32 %v1498, %v1561
        %v1578 = vmul.f32 %v1500, %v1562
        %v1579 = vmul.f32 %v1502, %v1563
        %v1580 = vmul.f32 %v1504, %v1564
        %v1581 = vmul.f32 %v1506, %v1565
        %v1582 = vmul.f32 %v1508, %v1566
        %v1583 = vmul.f32 %v1510, %v1567
        %v1584 = vmul.f32 %v1512, %v1568
        %v1585 = vmul.f32 %v1514, %v1569
        %v1586 = vmul.f32 %v1516, %v1570
        %v1587 = vmul.f32 %v1518, %v1571
        %v1588 = vmul.f32 %v1520, %v1572
        %v1589 = vmul.f32 %v1522, %v1573
        %v1590 = vmul.f32 %v1524, %v1574
        %v1591 = vmul.f32 %v1526, %v1575
        %v1592 = vmul.f32 %v1528, %v1576
        %v1593 = vpack.c.bf16 %v1578, %v1577
        %v1594 = vpack.c.bf16 %v1580, %v1579
        %v1595 = vpack.c.bf16 %v1582, %v1581
        %v1596 = vpack.c.bf16 %v1584, %v1583
        %v1597 = vpack.c.bf16 %v1586, %v1585
        %v1598 = vpack.c.bf16 %v1588, %v1587
        %v1599 = vpack.c.bf16 %v1590, %v1589
        %v1600 = vpack.c.bf16 %v1592, %v1591
        %v1601 = vld [vmem:[#allocation3] sm:$0xf]
        %v1602 = vld [vmem:[#allocation3 + $0x4] sm:$0xf]
        %v1603 = vld [vmem:[#allocation3 + $0x8] sm:$0xf]
        %v1604 = vld [vmem:[#allocation3 + $0xc] sm:$0xf]
        %v1605 = vld [vmem:[#allocation3 + $0x10] sm:$0xf]
        %v1606 = vld [vmem:[#allocation3 + $0x14] sm:$0xf]
        %v1607 = vld [vmem:[#allocation3 + $0x18] sm:$0xf]
        %v1608 = vld [vmem:[#allocation3 + $0x1c] sm:$0xf]
        %v1609 = vld [vmem:[#allocation3 + $0x20] sm:$0xf]
        %v1610 = vld [vmem:[#allocation3 + $0x24] sm:$0xf]
        %v1611 = vld [vmem:[#allocation3 + $0x28] sm:$0xf]
        %v1612 = vld [vmem:[#allocation3 + $0x2c] sm:$0xf]
        %v1613 = vld [vmem:[#allocation3 + $0x30] sm:$0xf]
        %v1614 = vld [vmem:[#allocation3 + $0x34] sm:$0xf]
        %v1615 = vld [vmem:[#allocation3 + $0x38] sm:$0xf]
        %v1616 = vld [vmem:[#allocation3 + $0x3c] sm:$0xf]
        %v1633 = vunpack.c.l.b16 %v1601
        %v1634 = vunpack.c.l.b16 %v1602
        %v1635 = vunpack.c.l.b16 %v1603
        %v1636 = vunpack.c.l.b16 %v1604
        %v1637 = vunpack.c.l.b16 %v1605
        %v1638 = vunpack.c.l.b16 %v1606
        %v1639 = vunpack.c.l.b16 %v1607
        %v1640 = vunpack.c.l.b16 %v1608
        %v1641 = vunpack.c.l.b16 %v1609
        %v1642 = vunpack.c.l.b16 %v1610
        %v1643 = vunpack.c.l.b16 %v1611
        %v1644 = vunpack.c.l.b16 %v1612
        %v1645 = vunpack.c.l.b16 %v1613
        %v1646 = vunpack.c.l.b16 %v1614
        %v1647 = vunpack.c.l.b16 %v1615
        %v1648 = vunpack.c.l.b16 %v1616
        %v1649 = vpack.c.b16 %v1634, %v1633
        %v1650 = vpack.c.b16 %v1636, %v1635
        %v1651 = vpack.c.b16 %v1638, %v1637
        %v1652 = vpack.c.b16 %v1640, %v1639
        %v1653 = vpack.c.b16 %v1642, %v1641
        %v1654 = vpack.c.b16 %v1644, %v1643
        %v1655 = vpack.c.b16 %v1646, %v1645
        %v1656 = vpack.c.b16 %v1648, %v1647
        %1665 = vmatpush.bf16.msra.mxu0 %v1656
        %1666 = vmatpush.bf16.msra.mxu0 %v1655
        %1667 = vmatpush.bf16.msra.mxu0 %v1654
        %1668 = vmatpush.bf16.msra.mxu0 %v1653
        %1669 = vmatpush.bf16.msra.mxu0 %v1652
        %1670 = vmatpush.bf16.msra.mxu0 %v1651
        %1671 = vmatpush.bf16.msra.mxu0 %v1650
        %1672 = vmatpush.bf16.msra.mxu0 %v1649
        %1673 = vmatmul.bf16.gmra.mxu0 %v1593
        %v1674 = vpop.f32.mrf.mxu0
        %v1675 = vadd.f32 0.0, %v1674
        %v1676 = vpop.f32.mrf.mxu0
        %v1677 = vadd.f32 0.0, %v1676
        %1678 = vmatmul.bf16.gmra.mxu0 %v1594
        %v1679 = vpop.f32.mrf.mxu0
        %v1680 = vadd.f32 0.0, %v1679
        %v1681 = vpop.f32.mrf.mxu0
        %v1682 = vadd.f32 0.0, %v1681
        %1683 = vmatmul.bf16.gmra.mxu0 %v1595
        %v1684 = vpop.f32.mrf.mxu0
        %v1685 = vadd.f32 0.0, %v1684
        %v1686 = vpop.f32.mrf.mxu0
        %v1687 = vadd.f32 0.0, %v1686
        %1688 = vmatmul.bf16.gmra.mxu0 %v1596
        %v1689 = vpop.f32.mrf.mxu0
        %v1690 = vadd.f32 0.0, %v1689
        %v1691 = vpop.f32.mrf.mxu0
        %v1692 = vadd.f32 0.0, %v1691
        %1693 = vmatmul.bf16.gmra.mxu0 %v1597
        %v1694 = vpop.f32.mrf.mxu0
        %v1695 = vadd.f32 0.0, %v1694
        %v1696 = vpop.f32.mrf.mxu0
        %v1697 = vadd.f32 0.0, %v1696
        %1698 = vmatmul.bf16.gmra.mxu0 %v1598
        %v1699 = vpop.f32.mrf.mxu0
        %v1700 = vadd.f32 0.0, %v1699
        %v1701 = vpop.f32.mrf.mxu0
        %v1702 = vadd.f32 0.0, %v1701
        %1703 = vmatmul.bf16.gmra.mxu0 %v1599
        %v1704 = vpop.f32.mrf.mxu0
        %v1705 = vadd.f32 0.0, %v1704
        %v1706 = vpop.f32.mrf.mxu0
        %v1707 = vadd.f32 0.0, %v1706
        %1708 = vmatmul.bf16.gmra.mxu0 %v1600
        %v1709 = vpop.f32.mrf.mxu0
        %v1710 = vadd.f32 0.0, %v1709
        %v1711 = vpop.f32.mrf.mxu0
        %v1712 = vadd.f32 0.0, %v1711
        %1713 = vdwg.mxu0
        %v1714 = vld [vmem:[#allocation12] sm:$0xf]
        %v1715 = vld [vmem:[#allocation12 + $0x4] sm:$0xf]
        %v1716 = vld [vmem:[#allocation12 + $0x8] sm:$0xf]
        %v1717 = vld [vmem:[#allocation12 + $0xc] sm:$0xf]
        %v1718 = vld [vmem:[#allocation12 + $0x10] sm:$0xf]
        %v1719 = vld [vmem:[#allocation12 + $0x14] sm:$0xf]
        %v1720 = vld [vmem:[#allocation12 + $0x18] sm:$0xf]
        %v1721 = vld [vmem:[#allocation12 + $0x1c] sm:$0xf]
        %v1722 = vld [vmem:[#allocation12 + $0x20] sm:$0xf]
        %v1723 = vld [vmem:[#allocation12 + $0x24] sm:$0xf]
        %v1724 = vld [vmem:[#allocation12 + $0x28] sm:$0xf]
        %v1725 = vld [vmem:[#allocation12 + $0x2c] sm:$0xf]
        %v1726 = vld [vmem:[#allocation12 + $0x30] sm:$0xf]
        %v1727 = vld [vmem:[#allocation12 + $0x34] sm:$0xf]
        %v1728 = vld [vmem:[#allocation12 + $0x38] sm:$0xf]
        %v1729 = vld [vmem:[#allocation12 + $0x3c] sm:$0xf]
        %v1730 = vld [vmem:[#allocation13 + $0x5] sm:$0x1]
        %v1731 = vpack.c.bf16 %v1677, %v1675
        %v1732 = vpack.c.bf16 %v1682, %v1680
        %v1733 = vpack.c.bf16 %v1687, %v1685
        %v1734 = vpack.c.bf16 %v1692, %v1690
        %v1735 = vpack.c.bf16 %v1697, %v1695
        %v1736 = vpack.c.bf16 %v1702, %v1700
        %v1737 = vpack.c.bf16 %v1707, %v1705
        %v1738 = vpack.c.bf16 %v1712, %v1710
        %v1739 = vperm.slane %v1730, 0
        %v1756 = vunpack.c.l.b16 %v1714
        %v1757 = vunpack.c.l.b16 %v1715
        %v1758 = vunpack.c.l.b16 %v1716
        %v1759 = vunpack.c.l.b16 %v1717
        %v1760 = vunpack.c.l.b16 %v1718
        %v1761 = vunpack.c.l.b16 %v1719
        %v1762 = vunpack.c.l.b16 %v1720
        %v1763 = vunpack.c.l.b16 %v1721
        %v1764 = vunpack.c.l.b16 %v1722
        %v1765 = vunpack.c.l.b16 %v1723
        %v1766 = vunpack.c.l.b16 %v1724
        %v1767 = vunpack.c.l.b16 %v1725
        %v1768 = vunpack.c.l.b16 %v1726
        %v1769 = vunpack.c.l.b16 %v1727
        %v1770 = vunpack.c.l.b16 %v1728
        %v1771 = vunpack.c.l.b16 %v1729
        %v1772 = vpack.c.b16 %v1757, %v1756
        %v1773 = vpack.c.b16 %v1759, %v1758
        %v1774 = vpack.c.b16 %v1761, %v1760
        %v1775 = vpack.c.b16 %v1763, %v1762
        %v1776 = vpack.c.b16 %v1765, %v1764
        %v1777 = vpack.c.b16 %v1767, %v1766
        %v1778 = vpack.c.b16 %v1769, %v1768
        %v1779 = vpack.c.b16 %v1771, %v1770
        %1788 = vmatpush.bf16.msra.mxu0 %v1779
        %1789 = vmatpush.bf16.msra.mxu0 %v1778
        %1790 = vmatpush.bf16.msra.mxu0 %v1777
        %1791 = vmatpush.bf16.msra.mxu0 %v1776
        %1792 = vmatpush.bf16.msra.mxu0 %v1775
        %1793 = vmatpush.bf16.msra.mxu0 %v1774
        %1794 = vmatpush.bf16.msra.mxu0 %v1773
        %1795 = vmatpush.bf16.msra.mxu0 %v1772
        %1796 = vmatmul.bf16.gmra.mxu0 %v1731
        %v1797 = vpop.f32.mrf.mxu0
        %v1798 = vadd.f32 %v1739, %v1797
        %v1799 = vpop.f32.mrf.mxu0
        %v1800 = vadd.f32 %v1739, %v1799
        %1801 = vmatmul.bf16.gmra.mxu0 %v1732
        %v1802 = vpop.f32.mrf.mxu0
        %v1803 = vadd.f32 %v1739, %v1802
        %v1804 = vpop.f32.mrf.mxu0
        %v1805 = vadd.f32 %v1739, %v1804
        %1806 = vmatmul.bf16.gmra.mxu0 %v1733
        %v1807 = vpop.f32.mrf.mxu0
        %v1808 = vadd.f32 %v1739, %v1807
        %v1809 = vpop.f32.mrf.mxu0
        %v1810 = vadd.f32 %v1739, %v1809
        %1811 = vmatmul.bf16.gmra.mxu0 %v1734
        %v1812 = vpop.f32.mrf.mxu0
        %v1813 = vadd.f32 %v1739, %v1812
        %v1814 = vpop.f32.mrf.mxu0
        %v1815 = vadd.f32 %v1739, %v1814
        %1816 = vmatmul.bf16.gmra.mxu0 %v1735
        %v1817 = vpop.f32.mrf.mxu0
        %v1818 = vadd.f32 %v1739, %v1817
        %v1819 = vpop.f32.mrf.mxu0
        %v1820 = vadd.f32 %v1739, %v1819
        %1821 = vmatmul.bf16.gmra.mxu0 %v1736
        %v1822 = vpop.f32.mrf.mxu0
        %v1823 = vadd.f32 %v1739, %v1822
        %v1824 = vpop.f32.mrf.mxu0
        %v1825 = vadd.f32 %v1739, %v1824
        %1826 = vmatmul.bf16.gmra.mxu0 %v1737
        %v1827 = vpop.f32.mrf.mxu0
        %v1828 = vadd.f32 %v1739, %v1827
        %v1829 = vpop.f32.mrf.mxu0
        %v1830 = vadd.f32 %v1739, %v1829
        %1831 = vmatmul.bf16.gmra.mxu0 %v1738
        %v1832 = vpop.f32.mrf.mxu0
        %v1833 = vadd.f32 %v1739, %v1832
        %v1834 = vpop.f32.mrf.mxu0
        %v1835 = vadd.f32 %v1739, %v1834
        %1836 = vdwg.mxu0
        %v1837 = vmax.f32 %v1798, 0.0
        %v1838 = vmax.f32 %v1800, 0.0
        %v1839 = vmax.f32 %v1803, 0.0
        %v1840 = vmax.f32 %v1805, 0.0
        %v1841 = vmax.f32 %v1808, 0.0
        %v1842 = vmax.f32 %v1810, 0.0
        %v1843 = vmax.f32 %v1813, 0.0
        %v1844 = vmax.f32 %v1815, 0.0
        %v1845 = vmax.f32 %v1818, 0.0
        %v1846 = vmax.f32 %v1820, 0.0
        %v1847 = vmax.f32 %v1823, 0.0
        %v1848 = vmax.f32 %v1825, 0.0
        %v1849 = vmax.f32 %v1828, 0.0
        %v1850 = vmax.f32 %v1830, 0.0
        %v1851 = vmax.f32 %v1833, 0.0
        %v1852 = vmax.f32 %v1835, 0.0
        %1853 = vst [vmem:[%s428] sm:$0xff] %v1837
        %1854 = vst [vmem:[%s428 + $0x8] sm:$0xff] %v1838
        %1855 = vst [vmem:[%s428 + $0x10] sm:$0xff] %v1839
        %1856 = vst [vmem:[%s428 + $0x18] sm:$0xff] %v1840
        %1857 = vst [vmem:[%s428 + $0x20] sm:$0xff] %v1841
        %1858 = vst [vmem:[%s428 + $0x28] sm:$0xff] %v1842
        %1859 = vst [vmem:[%s428 + $0x30] sm:$0xff] %v1843
        %1860 = vst [vmem:[%s428 + $0x38] sm:$0xff] %v1844
        %1861 = vst [vmem:[%s428 + $0x40] sm:$0xff] %v1845
        %1862 = vst [vmem:[%s428 + $0x48] sm:$0xff] %v1846
        %1863 = vst [vmem:[%s428 + $0x50] sm:$0xff] %v1847
        %1864 = vst [vmem:[%s428 + $0x58] sm:$0xff] %v1848
        %1865 = vst [vmem:[%s428 + $0x60] sm:$0xff] %v1849
        %1866 = vst [vmem:[%s428 + $0x68] sm:$0xff] %v1850
        %1867 = vst [vmem:[%s428 + $0x70] sm:$0xff] %v1851
        %1868 = vst [vmem:[%s428 + $0x78] sm:$0xff] %v1852
        %1869 = vst [vmem:[%s435] sm:$0xff] %v1577
        %1870 = vst [vmem:[%s435 + $0x8] sm:$0xff] %v1578
        %1871 = vst [vmem:[%s435 + $0x10] sm:$0xff] %v1579
        %1872 = vst [vmem:[%s435 + $0x18] sm:$0xff] %v1580
        %1873 = vst [vmem:[%s435 + $0x20] sm:$0xff] %v1581
        %1874 = vst [vmem:[%s435 + $0x28] sm:$0xff] %v1582
        %1875 = vst [vmem:[%s435 + $0x30] sm:$0xff] %v1583
        %1876 = vst [vmem:[%s435 + $0x38] sm:$0xff] %v1584
        %1877 = vst [vmem:[%s435 + $0x40] sm:$0xff] %v1585
        %1878 = vst [vmem:[%s435 + $0x48] sm:$0xff] %v1586
        %1879 = vst [vmem:[%s435 + $0x50] sm:$0xff] %v1587
        %1880 = vst [vmem:[%s435 + $0x58] sm:$0xff] %v1588
        %1881 = vst [vmem:[%s435 + $0x60] sm:$0xff] %v1589
        %1882 = vst [vmem:[%s435 + $0x68] sm:$0xff] %v1590
        %1883 = vst [vmem:[%s435 + $0x70] sm:$0xff] %v1591
        %1884 = vst [vmem:[%s435 + $0x78] sm:$0xff] %v1592
        %s1885 = sand.u32 %s193, 1
        %s1886 = scalar_lea.sflag [#allocation6], %s1885
        %s1887 = sand.u32 %s193, 1
        %s1888 = smul.addr %s1887, 128
        %s1889 = scalar_lea.vmem [#allocation15], %s1888
        %s1890 = sand.u32 %s221, 1
        %s1891 = scalar_lea.sflag [#allocation17], %s1890
        %s1892 = sand.u32 %s221, 1
        %s1893 = smul.addr %s1892, 128
        %s1894 = scalar_lea.vmem [#allocation16], %s1893
        // Predicated region
        $region73: #{tpu_custom_call.1} parent=43 // pred_check
          %p1895 = pneg %p203
        $region74: #{tpu_custom_call.1} parent=43 // pred_check_branch
          %1897 = sbr.rel (%p1895) target = $region76
        $region75: #{tpu_custom_call.1} parent=43 // pred_region
          %s1898 = smul.u32 16, %s38
          %1900 = vsyncadd %s1886, 0
          %s1901 = smul.addr %s37, 32
          %s1902 = sadd.s32 %s1898, %s1901
          %s1903 = smul.addr %s1902, 8
          %s1904 = scalar_lea.hbm %s6, %s1903
          %s1905 = sshll.u32 %s1889, 4
          %s1906 = int_to_ptr.vmem [resolvable:$true] %s1905
          %s1907 = sshll.u32 %s1904, 4
          %s1908 = int_to_ptr.hbm [resolvable:$true] %s1907
          %1913 = dma.vmem_to_hbm [thread:$0]  %s1906, 2048, %s1908, %s1886, 128, 128, 8
        $region76: #{tpu_custom_call.1} parent=43 // pred_fallthru
          _
        // Predicated region
        $region77: #{tpu_custom_call.1} parent=43 // pred_check
          %p1914 = pneg %p231
        $region78: #{tpu_custom_call.1} parent=43 // pred_check_branch
          %1916 = sbr.rel (%p1914) target = $region80
        $region79: #{tpu_custom_call.1} parent=43 // pred_region
          %s1917 = smul.u32 16, %s38
          %1919 = vsyncadd %s1891, 0
          %s1920 = smul.addr %s37, 32
          %s1921 = sadd.s32 %s1917, %s1920
          %s1922 = smul.addr %s1921, 8
          %s1923 = scalar_lea.hbm %s7, %s1922
          %s1924 = sshll.u32 %s1894, 4
          %s1925 = int_to_ptr.vmem [resolvable:$true] %s1924
          %s1926 = sshll.u32 %s1923, 4
          %s1927 = int_to_ptr.hbm [resolvable:$true] %s1926
          %1932 = dma.vmem_to_hbm [thread:$0]  %s1925, 2048, %s1927, %s1891, 128, 128, 8
        $region80: #{tpu_custom_call.1} parent=43 // pred_fallthru
          _
      $region44: #{tpu_custom_call.1} parent=5 // pred_fallthru
        _
      %p1933 = scmp.le.s32.totalorder 2, %s28
      // Predicated region
      $region81: #{tpu_custom_call.1} parent=5 // pred_check
        %p1934 = pneg %p1933
      $region82: #{tpu_custom_call.1} parent=5 // pred_check_branch
        %1936 = sbr.rel (%p1934) target = $region84
      $region83: #{tpu_custom_call.1} parent=5 // pred_region
        %s1937 = ssub.s32 %s28, 2
        // Predicated region
        $region85: #{tpu_custom_call.1} parent=83 // pred_check
          %p1938 = pneg %p209
        $region86: #{tpu_custom_call.1} parent=83 // pred_check_branch
          %1940 = sbr.rel (%p1938) target = $region88
        $region87: #{tpu_custom_call.1} parent=83 // pred_region
          %s1941 = sand.u32 %s194, 1
          %s1942 = scalar_lea.sflag [#allocation6], %s1941
          %s1943 = sand.u32 %s194, 1
          %s1944 = smul.addr %s1943, 128
          %s1945 = scalar_lea.vmem [#allocation15], %s1944
          %1947 = dma.done %s1942, 2048
        $region88: #{tpu_custom_call.1} parent=83 // pred_fallthru
          _
        // Predicated region
        $region89: #{tpu_custom_call.1} parent=83 // pred_check
          %p1948 = pneg %p237
        $region90: #{tpu_custom_call.1} parent=83 // pred_check_branch
          %1950 = sbr.rel (%p1948) target = $region92
        $region91: #{tpu_custom_call.1} parent=83 // pred_region
          %s1951 = sand.u32 %s222, 1
          %s1952 = scalar_lea.sflag [#allocation17], %s1951
          %s1953 = sand.u32 %s222, 1
          %s1954 = smul.addr %s1953, 128
          %s1955 = scalar_lea.vmem [#allocation16], %s1954
          %1957 = dma.done %s1952, 2048
        $region92: #{tpu_custom_call.1} parent=83 // pred_fallthru
          _
      $region84: #{tpu_custom_call.1} parent=5 // pred_fallthru
        _
    $region6: #{tpu_custom_call.1} parent=1 // loop_footer
      %s32 = sadd.s32 1, %s28
    $region7: #{tpu_custom_call.1} parent=1 // loop_footer_branch
      %27 = sbr.rel target = $region3
    $region8: #{tpu_custom_call.1} parent=1 // loop_exit
      _
    %1958 = vsyncpa [#allocation5], 1
    %s1959 = scalar_lea.sflag [#allocation5], 1
    %1960 = vsyncpa %s1959, 1
    %1961 = vsyncpa [#allocation8], 1
    %s1962 = scalar_lea.sflag [#allocation8], 1
    %1963 = vsyncpa %s1962, 1
    %1964 = vsyncpa [#allocation11], 1
    %1965 = vsyncpa [#allocation14], 1
    %1966 = vsyncpa [#allocation6], 1
    %s1967 = scalar_lea.sflag [#allocation6], 1
    %1968 = vsyncpa %s1967, 1
    %1969 = vsyncpa [#allocation17], 1
    %s1970 = scalar_lea.sflag [#allocation17], 1
    %1971 = vsyncpa %s1970, 1

</llo_original>
